<compile_context>
chip_gen: v6e
topology: v6e:2x2x1
jax: 0.10.0
libtpu: 0.0.40
codegen_flags: <defaults>
</compile_context>

<pallas_src>
import math
import functools
import numpy as np
import jax
import jax.numpy as jnp
from jax.experimental import pallas as pl
from jax.experimental.pallas import tpu as pltpu

EPS = 1e-5          # torch.nn.LayerNorm default eps
NEG_BIG = -1e30


def _layer_norm(x, gamma, beta):
    mu = jnp.mean(x, axis=-1, keepdims=True)
    var = jnp.mean((x - mu) ** 2, axis=-1, keepdims=True)
    return (x - mu) * jax.lax.rsqrt(var + EPS) * gamma + beta


# ---------------------------------------------------------------------------
# Fused encoder kernel: grid = (batch_block, layer)
# ---------------------------------------------------------------------------
def _encoder_kernel(tb, T, n_head, d_k, d_v,
                    lens_ref,                                     # SMEM (B,)
                    x_ref, w_in_ref, ln_in_ref, pe_ref,           # consts
                    wqkv_ref, bqkv_ref, wo_ref, w1_ref, b1_ref,   # per layer
                    w2_ref, vec_ref,
                    o_ref):                                       # (tb*T, Dm) carry
    nb = pl.program_id(0)
    l = pl.program_id(1)
    TB = tb * T

    # --- masks built in-kernel from scalar-prefetched lengths ---------------
    rpos = jax.lax.broadcasted_iota(jnp.int32, (TB, 1), 0)
    cpos = jax.lax.broadcasted_iota(jnp.int32, (1, TB), 1)
    npm = jnp.zeros((TB, 1), jnp.float32)              # non-pad mask (rows)
    bias = jnp.full((TB, TB), NEG_BIG, jnp.float32)    # additive key bias
    for j in range(tb):                                # tb is small & static
        lj = lens_ref[nb * tb + j]
        row_in = (rpos >= j * T) & (rpos < (j + 1) * T)
        row_ok = (rpos >= j * T) & (rpos < j * T + lj)
        col_ok = (cpos >= j * T) & (cpos < j * T + lj)
        npm = jnp.where(row_ok, 1.0, npm)
        bias = jnp.where(row_in & col_ok, 0.0, bias)   # same batch & valid key

    # --- prologue: linear_in + LayerNorm + positional encoding (layer 0) ----
    @pl.when(l == 0)
    def _():
        xb = x_ref[...].astype(jnp.bfloat16)
        h0 = jnp.dot(xb, w_in_ref[...], preferred_element_type=jnp.float32)
        h0 = h0 + ln_in_ref[0:1, :]
        o_ref[...] = _layer_norm(h0, ln_in_ref[1:2, :], ln_in_ref[2:3, :]) + pe_ref[...]

    residual = o_ref[...]                              # (TB, Dm) f32, VMEM-resident
    xb = residual.astype(jnp.bfloat16)

    # ---- multi-head self-attention (fused QKV, per-head output-proj acc) ----
    qkv = jnp.dot(xb, wqkv_ref[0], preferred_element_type=jnp.float32) + bqkv_ref[0]
    hk = n_head * d_k
    scale = 1.0 / math.sqrt(d_k)
    q_all = qkv[:, :hk] * scale                        # scaled once, in f32
    k_all = qkv[:, hk:2 * hk]
    v_all = qkv[:, 2 * hk:]
    wo_full = wo_ref[0]                                # (H*d_v, Dm) bf16

    attn_out = None
    for h in range(n_head):
        qh = q_all[:, h * d_k:(h + 1) * d_k].astype(jnp.bfloat16)
        kh = k_all[:, h * d_k:(h + 1) * d_k].astype(jnp.bfloat16)
        vh = v_all[:, h * d_v:(h + 1) * d_v].astype(jnp.bfloat16)
        s = jax.lax.dot_general(qh, kh, (((1,), (1,)), ((), ())),
                                preferred_element_type=jnp.float32)   # (TB, TB)
        s = s + bias
        s = s - jnp.max(s, axis=-1, keepdims=True)
        e = jnp.exp(s)
        p = e * pl.reciprocal(jnp.sum(e, axis=-1, keepdims=True), approx=True)
        ctx_h = jnp.dot(p.astype(jnp.bfloat16), vh,
                        preferred_element_type=jnp.float32)           # (TB, d_v)
        part = jnp.dot(ctx_h.astype(jnp.bfloat16),
                       wo_full[h * d_v:(h + 1) * d_v, :],
                       preferred_element_type=jnp.float32)            # (TB, Dm)
        attn_out = part if attn_out is None else attn_out + part

    vec = vec_ref[0]                                   # (6, Dm): bo,g1,be1,b2,g2,be2
    bo, g1, be1 = vec[0:1, :], vec[1:2, :], vec[2:3, :]
    b2, g2, be2 = vec[3:4, :], vec[4:5, :], vec[5:6, :]

    h1 = _layer_norm(attn_out + bo + residual, g1, be1) * npm

    # ---- position-wise feed-forward ----
    f = jnp.dot(h1.astype(jnp.bfloat16), w1_ref[0],
                preferred_element_type=jnp.float32) + b1_ref[0]
    f = jnp.maximum(f, 0.0)
    f2 = jnp.dot(f.astype(jnp.bfloat16), w2_ref[0],
                 preferred_element_type=jnp.float32) + b2
    o_ref[...] = _layer_norm(f2 + h1, g2, be2) * npm   # carry for next layer


def encoder_forward(padded_input, input_lengths, prep, n_head, d_k, d_v,
                    batch_tile=None):
    B, T, Din = padded_input.shape
    Dm = prep["w_in"].shape[1]
    L = prep["wqkv"].shape[0]
    tb = B if batch_tile is None else batch_tile
    assert B % tb == 0 and (tb * T) % 8 == 0
    NB = B // tb
    TB = tb * T

    x2 = padded_input.reshape(B * T, Din)
    pe_slab = jnp.tile(prep["pe"][:T], (tb, 1))        # (TB, Dm), built at trace time

    def const2(shape):
        return pl.BlockSpec(shape, lambda nb, l, lens: (0, 0))

    def layer3(a):
        return pl.BlockSpec((1,) + a.shape[1:], lambda nb, l, lens: (l, 0, 0))

    in_specs = [
        pl.BlockSpec((TB, Din), lambda nb, l, lens: (nb, 0)),   # x slab
        const2(prep["w_in"].shape),                             # w_in
        const2(prep["ln_in"].shape),                            # (3, Dm)
        const2((TB, Dm)),                                       # pe slab
        layer3(prep["wqkv"]), layer3(prep["bqkv"]),
        layer3(prep["wo"]),
        layer3(prep["w1"]), layer3(prep["b1"]),
        layer3(prep["w2"]),
        layer3(prep["vec"]),
    ]

    grid_spec = pltpu.PrefetchScalarGridSpec(
        num_scalar_prefetch=1,
        grid=(NB, L),
        in_specs=in_specs,
        out_specs=pl.BlockSpec((TB, Dm), lambda nb, l, lens: (nb, 0)),
    )

    kernel = functools.partial(_encoder_kernel, tb, T, n_head, d_k, d_v)
    out = pl.pallas_call(
        kernel,
        out_shape=jax.ShapeDtypeStruct((B * T, Dm), jnp.float32),
        grid_spec=grid_spec,
        compiler_params=pltpu.CompilerParams(
            dimension_semantics=("parallel", "arbitrary")),
    )(input_lengths.astype(jnp.int32), x2,
      prep["w_in"], prep["ln_in"], pe_slab,
      prep["wqkv"], prep["bqkv"], prep["wo"],
      prep["w1"], prep["b1"], prep["w2"], prep["vec"])
    return out.reshape(B, T, Dm)


# ---------------------------------------------------------------------------
# Parameter init (shapes follow the torch module) + kernel-ready packing
# ---------------------------------------------------------------------------
def make_positional_encoding(d_model, max_len):
    position = jnp.arange(max_len, dtype=jnp.float32)[:, None]
    div_term = jnp.exp(jnp.arange(0, d_model, 2, dtype=jnp.float32)
                       * -(math.log(10000.0) / d_model))
    pe = jnp.zeros((max_len, d_model), jnp.float32)
    pe = pe.at[:, 0::2].set(jnp.sin(position * div_term))
    pe = pe.at[:, 1::2].set(jnp.cos(position * div_term))
    return pe


def init_encoder_params(key, d_input, n_layers, n_head, d_k, d_v, d_model,
                        d_inner, pe_maxlen):
    keys = iter(jax.random.split(key, 32))
    nk = lambda: next(keys)
    rnd = lambda shp, std: jax.random.normal(nk(), shp, jnp.float32) * std
    L, H = n_layers, n_head
    std_qk = math.sqrt(2.0 / (d_model + d_k))
    std_v = math.sqrt(2.0 / (d_model + d_v))
    std_fc = math.sqrt(2.0 / (n_head * d_v + d_model))
    return {
        "w_in": rnd((d_input, d_model), 1.0 / math.sqrt(d_input)),
        "b_in": rnd((1, d_model), 0.02),
        "g_in": jnp.ones((1, d_model), jnp.float32),
        "be_in": jnp.zeros((1, d_model), jnp.float32),
        "pe": make_positional_encoding(d_model, pe_maxlen),
        "wq": rnd((L, d_model, H * d_k), std_qk),
        "bq": rnd((L, 1, H * d_k), 0.02),
        "wk": rnd((L, d_model, H * d_k), std_qk),
        "bk": rnd((L, 1, H * d_k), 0.02),
        "wv": rnd((L, d_model, H * d_v), std_v),
        "bv": rnd((L, 1, H * d_v), 0.02),
        "wo": rnd((L, H * d_v, d_model), std_fc),
        "bo": rnd((L, 1, d_model), 0.02),
        "g1": jnp.ones((L, 1, d_model), jnp.float32),
        "be1": jnp.zeros((L, 1, d_model), jnp.float32),
        "w1": rnd((L, d_model, d_inner), 1.0 / math.sqrt(d_model)),
        "b1": rnd((L, 1, d_inner), 0.02),
        "w2": rnd((L, d_inner, d_model), 1.0 / math.sqrt(d_inner)),
        "b2": rnd((L, 1, d_model), 0.02),
        "g2": jnp.ones((L, 1, d_model), jnp.float32),
        "be2": jnp.zeros((L, 1, d_model), jnp.float32),
    }


def prepare_params(p):
    """Pack per-layer weights for the fused kernel: fused QKV, packed small
    vectors, bf16 matmul weights."""
    bf = lambda a: a.astype(jnp.bfloat16)
    wqkv = jnp.concatenate([p["wq"], p["wk"], p["wv"]], axis=-1)     # (L, Dm, 3*H*dk)
    bqkv = jnp.concatenate([p["bq"], p["bk"], p["bv"]], axis=-1)     # (L, 1, 3*H*dk)
    vec = jnp.concatenate([p["bo"], p["g1"], p["be1"],
                           p["b2"], p["g2"], p["be2"]], axis=1)      # (L, 6, Dm)
    ln_in = jnp.concatenate([p["b_in"], p["g_in"], p["be_in"]], axis=0)  # (3, Dm)
    return {
        "w_in": bf(p["w_in"]), "ln_in": ln_in, "pe": p["pe"],
        "wqkv": bf(wqkv), "bqkv": bqkv,
        "wo": bf(p["wo"]),
        "w1": bf(p["w1"]), "b1": p["b1"],
        "w2": bf(p["w2"]),
        "vec": vec,
    }


# ---------------------------------------------------------------------------
# Pure-JAX reference (same bf16-matmul / f32-accumulate numerics)
# ---------------------------------------------------------------------------
def encoder_reference(padded_input, input_lengths, p, n_head, d_k, d_v):
    B, T, _ = padded_input.shape
    L, H = p["wq"].shape[0], n_head
    pos = jnp.arange(T)
    npm = (pos[None, :] < input_lengths[:, None]).astype(jnp.float32)[:, :, None]
    bias = jnp.where(pos[None, :] >= input_lengths[:, None], NEG_BIG, 0.0)  # (B,T)

    def mm(a, w):
        return jax.lax.dot_general(
            a.astype(jnp.bfloat16), w.astype(jnp.bfloat16),
            (((a.ndim - 1,), (0,)), ((), ())),
            preferred_element_type=jnp.float32)

    h = mm(padded_input, p["w_in"]) + p["b_in"]
    h = _layer_norm(h, p["g_in"], p["be_in"]) + p["pe"][:T][None]
    scale = 1.0 / math.sqrt(d_k)
    for l in range(L):
        res = h
        q = ((mm(h, p["wq"][l]) + p["bq"][l]) * scale).reshape(B, T, H, d_k)
        k = (mm(h, p["wk"][l]) + p["bk"][l]).reshape(B, T, H, d_k)
        v = (mm(h, p["wv"][l]) + p["bv"][l]).reshape(B, T, H, d_v)
        s = jnp.einsum("bthd,bshd->bhts", q.astype(jnp.bfloat16),
                       k.astype(jnp.bfloat16),
                       preferred_element_type=jnp.float32)
        s = s + bias[:, None, None, :]
        attn = jax.nn.softmax(s, axis=-1)
        ctx = jnp.einsum("bhts,bshd->bthd", attn.astype(jnp.bfloat16),
                         v.astype(jnp.bfloat16),
                         preferred_element_type=jnp.float32)
        ctx = ctx.reshape(B, T, H * d_v)
        out = mm(ctx, p["wo"][l]) + p["bo"][l]
        h = _layer_norm(out + res, p["g1"][l], p["be1"][l]) * npm
        res = h
        f = jnp.maximum(mm(h, p["w1"][l]) + p["b1"][l], 0.0)
        f2 = mm(f, p["w2"][l]) + p["b2"][l]
        h = _layer_norm(f2 + res, p["g2"][l], p["be2"][l]) * npm
    return h


if __name__ == "__main__":
    # Encoder(d_input, n_layers, n_head, d_k, d_v, d_model, d_inner)
    d_input, n_layers, n_head = 16, 2, 4
    d_k = d_v = 8
    d_model, d_inner = 32, 64
    B, T = 2, 8

    key = jax.random.PRNGKey(0)
    k_x, k_p = jax.random.split(key)
    padded_input = jax.random.normal(k_x, (B, T, d_input), jnp.float32)
    input_lengths = jnp.array([8, 5], dtype=jnp.int32)
    valid = (jnp.arange(T)[None, :] < input_lengths[:, None]).astype(jnp.float32)
    padded_input = padded_input * valid[:, :, None]   # zero padded frames

    params = init_encoder_params(k_p, d_input, n_layers, n_head, d_k, d_v,
                                 d_model, d_inner, pe_maxlen=5000)
    prep = prepare_params(params)

    out = encoder_forward(padded_input, input_lengths, prep, n_head, d_k, d_v)
    out = jax.block_until_ready(out)

    ref = encoder_reference(padded_input, input_lengths, params, n_head, d_k, d_v)
    ref = jax.block_until_ready(ref)

    assert out.shape == (B, T, d_model)
    np.testing.assert_allclose(np.asarray(out), np.asarray(ref),
                               rtol=2e-2, atol=2e-2)
    print("KERNEL_OK")
</pallas_src>

<mosaic_0001>
module attributes {stable_mosaic.version = 11 : i64} {
  func.func @_encoder_kernel(%arg0: i32, %arg1: i32, %arg2: memref<2xi32, #tpu.memory_space<smem>>, %arg3: memref<16x16xf32, #tpu.memory_space<vmem>>, %arg4: memref<16x32xbf16, #tpu.memory_space<vmem>>, %arg5: memref<3x32xf32, #tpu.memory_space<vmem>>, %arg6: memref<16x32xf32, #tpu.memory_space<vmem>>, %arg7: memref<1x32x96xbf16, #tpu.memory_space<vmem>>, %arg8: memref<1x1x96xf32, #tpu.memory_space<vmem>>, %arg9: memref<1x32x32xbf16, #tpu.memory_space<vmem>>, %arg10: memref<1x32x64xbf16, #tpu.memory_space<vmem>>, %arg11: memref<1x1x64xf32, #tpu.memory_space<vmem>>, %arg12: memref<1x64x32xbf16, #tpu.memory_space<vmem>>, %arg13: memref<1x6x32xf32, #tpu.memory_space<vmem>>, %arg14: memref<16x32xf32, #tpu.memory_space<vmem>>) attributes {dimension_semantics = [#tpu.dimension_semantics<parallel>, #tpu.dimension_semantics<arbitrary>], iteration_bounds = array<i64: 1, 2>, scalar_prefetch = 1 : i64, scratch_operands = 0 : i64, tpu.core_type = #tpu.core_type<tc>, window_params = [{transform_indices = @transform_0, window_bounds = array<i64: 16, 16>}, {pipeline_mode = #tpu.pipeline_mode<synchronous>, transform_indices = @transform_1, window_bounds = array<i64: 16, 32>}, {pipeline_mode = #tpu.pipeline_mode<synchronous>, transform_indices = @transform_2, window_bounds = array<i64: 3, 32>}, {pipeline_mode = #tpu.pipeline_mode<synchronous>, transform_indices = @transform_3, window_bounds = array<i64: 16, 32>}, {transform_indices = @transform_4, window_bounds = array<i64: 1, 32, 96>}, {transform_indices = @transform_5, window_bounds = array<i64: 1, 1, 96>}, {transform_indices = @transform_6, window_bounds = array<i64: 1, 32, 32>}, {transform_indices = @transform_7, window_bounds = array<i64: 1, 32, 64>}, {transform_indices = @transform_8, window_bounds = array<i64: 1, 1, 64>}, {transform_indices = @transform_9, window_bounds = array<i64: 1, 64, 32>}, {transform_indices = @transform_10, window_bounds = array<i64: 1, 6, 32>}, {transform_indices = @transform_11, window_bounds = array<i64: 16, 32>}]} {
    %0 = tpu.iota {dimensions = array<i32: 0>} : vector<16x1xi32>
    %1 = tpu.iota {dimensions = array<i32: 1>} : vector<1x16xi32>
    %cst = arith.constant 0.000000e+00 : f32
    %2 = vector.broadcast %cst : f32 to vector<16x1xf32>
    %cst_0 = arith.constant -1.000000e+30 : f32
    %3 = vector.broadcast %cst_0 : f32 to vector<16x16xf32>
    %c2_i32 = arith.constant 2 : i32
    %4 = arith.muli %arg0, %c2_i32 : i32
    %c0_i32 = arith.constant 0 : i32
    %5 = arith.addi %4, %c0_i32 : i32
    %6 = arith.index_cast %5 : i32 to index
    %7 = memref.load %arg2[%6] : memref<2xi32, #tpu.memory_space<smem>>
    %c0_i32_1 = arith.constant 0 : i32
    %8 = vector.broadcast %c0_i32_1 : i32 to vector<16x1xi32>
    %9 = arith.cmpi sge, %0, %8 : vector<16x1xi32>
    %c8_i32 = arith.constant 8 : i32
    %10 = vector.broadcast %c8_i32 : i32 to vector<16x1xi32>
    %11 = arith.cmpi slt, %0, %10 : vector<16x1xi32>
    %12 = arith.andi %9, %11 : vector<16x1xi1>
    %c0_i32_2 = arith.constant 0 : i32
    %13 = vector.broadcast %c0_i32_2 : i32 to vector<16x1xi32>
    %14 = arith.cmpi sge, %0, %13 : vector<16x1xi32>
    %c0_i32_3 = arith.constant 0 : i32
    %15 = arith.addi %c0_i32_3, %7 : i32
    %16 = vector.broadcast %15 : i32 to vector<16x1xi32>
    %17 = arith.cmpi slt, %0, %16 : vector<16x1xi32>
    %18 = arith.andi %14, %17 : vector<16x1xi1>
    %c0_i32_4 = arith.constant 0 : i32
    %19 = vector.broadcast %c0_i32_4 : i32 to vector<1x16xi32>
    %20 = arith.cmpi sge, %1, %19 : vector<1x16xi32>
    %c0_i32_5 = arith.constant 0 : i32
    %21 = arith.addi %c0_i32_5, %7 : i32
    %22 = vector.broadcast %21 : i32 to vector<1x16xi32>
    %23 = arith.cmpi slt, %1, %22 : vector<1x16xi32>
    %24 = arith.andi %20, %23 : vector<1x16xi1>
    %cst_6 = arith.constant 1.000000e+00 : f32
    %25 = vector.broadcast %cst_6 : f32 to vector<16x1xf32>
    %26 = arith.select %18, %25, %2 : vector<16x1xi1>, vector<16x1xf32>
    %27 = vector.broadcast %12 : vector<16x1xi1> to vector<16x16xi1>
    %28 = vector.broadcast %24 : vector<1x16xi1> to vector<16x16xi1>
    %29 = arith.andi %27, %28 : vector<16x16xi1>
    %cst_7 = arith.constant 0.000000e+00 : f32
    %30 = vector.broadcast %cst_7 : f32 to vector<16x16xf32>
    %31 = arith.select %29, %30, %3 : vector<16x16xi1>, vector<16x16xf32>
    %c2_i32_8 = arith.constant 2 : i32
    %32 = arith.muli %arg0, %c2_i32_8 : i32
    %c1_i32 = arith.constant 1 : i32
    %33 = arith.addi %32, %c1_i32 : i32
    %34 = arith.index_cast %33 : i32 to index
    %35 = memref.load %arg2[%34] : memref<2xi32, #tpu.memory_space<smem>>
    %c8_i32_9 = arith.constant 8 : i32
    %36 = vector.broadcast %c8_i32_9 : i32 to vector<16x1xi32>
    %37 = arith.cmpi sge, %0, %36 : vector<16x1xi32>
    %c16_i32 = arith.constant 16 : i32
    %38 = vector.broadcast %c16_i32 : i32 to vector<16x1xi32>
    %39 = arith.cmpi slt, %0, %38 : vector<16x1xi32>
    %40 = arith.andi %37, %39 : vector<16x1xi1>
    %c8_i32_10 = arith.constant 8 : i32
    %41 = vector.broadcast %c8_i32_10 : i32 to vector<16x1xi32>
    %42 = arith.cmpi sge, %0, %41 : vector<16x1xi32>
    %c8_i32_11 = arith.constant 8 : i32
    %43 = arith.addi %c8_i32_11, %35 : i32
    %44 = vector.broadcast %43 : i32 to vector<16x1xi32>
    %45 = arith.cmpi slt, %0, %44 : vector<16x1xi32>
    %46 = arith.andi %42, %45 : vector<16x1xi1>
    %c8_i32_12 = arith.constant 8 : i32
    %47 = vector.broadcast %c8_i32_12 : i32 to vector<1x16xi32>
    %48 = arith.cmpi sge, %1, %47 : vector<1x16xi32>
    %c8_i32_13 = arith.constant 8 : i32
    %49 = arith.addi %c8_i32_13, %35 : i32
    %50 = vector.broadcast %49 : i32 to vector<1x16xi32>
    %51 = arith.cmpi slt, %1, %50 : vector<1x16xi32>
    %52 = arith.andi %48, %51 : vector<1x16xi1>
    %cst_14 = arith.constant 1.000000e+00 : f32
    %53 = vector.broadcast %cst_14 : f32 to vector<16x1xf32>
    %54 = arith.select %46, %53, %26 : vector<16x1xi1>, vector<16x1xf32>
    %55 = vector.broadcast %40 : vector<16x1xi1> to vector<16x16xi1>
    %56 = vector.broadcast %52 : vector<1x16xi1> to vector<16x16xi1>
    %57 = arith.andi %55, %56 : vector<16x16xi1>
    %cst_15 = arith.constant 0.000000e+00 : f32
    %58 = vector.broadcast %cst_15 : f32 to vector<16x16xf32>
    %59 = arith.select %57, %58, %31 : vector<16x16xi1>, vector<16x16xf32>
    %c0_i32_16 = arith.constant 0 : i32
    %60 = arith.cmpi eq, %arg1, %c0_i32_16 : i32
    %61 = arith.extui %60 : i1 to i32
    %c0_i32_17 = arith.constant 0 : i32
    %62 = arith.cmpi ne, %61, %c0_i32_17 : i32
    scf.if %62 {
      %c0_77 = arith.constant 0 : index
      %c0_78 = arith.constant 0 : index
      %251 = vector.load %arg3[%c0_77, %c0_78] : memref<16x16xf32, #tpu.memory_space<vmem>>, vector<16x16xf32>
      %252 = arith.truncf %251 : vector<16x16xf32> to vector<16x16xbf16>
      %c0_79 = arith.constant 0 : index
      %c0_80 = arith.constant 0 : index
      %253 = vector.load %arg4[%c0_79, %c0_80] : memref<16x32xbf16, #tpu.memory_space<vmem>>, vector<16x32xbf16>
      %cst_81 = arith.constant dense<0.000000e+00> : vector<16x32xf32>
      %254 = tpu.matmul %252, %253, %cst_81 {dimension_numbers = #tpu.dot_dimension_numbers<[1], [0], [0], [1], [0, 0, 1, 1], [], []>} : vector<16x16xbf16>, vector<16x32xbf16>, vector<16x32xf32> -> vector<16x32xf32>
      %c0_82 = arith.constant 0 : index
      %c0_83 = arith.constant 0 : index
      %255 = vector.load %arg5[%c0_82, %c0_83] : memref<3x32xf32, #tpu.memory_space<vmem>>, vector<1x32xf32>
      %256 = vector.broadcast %255 : vector<1x32xf32> to vector<16x32xf32>
      %257 = arith.addf %254, %256 : vector<16x32xf32>
      %c1 = arith.constant 1 : index
      %c0_84 = arith.constant 0 : index
      %258 = vector.load %arg5[%c1, %c0_84] : memref<3x32xf32, #tpu.memory_space<vmem>>, vector<1x32xf32>
      %c2 = arith.constant 2 : index
      %c0_85 = arith.constant 0 : index
      %259 = vector.load %arg5[%c2, %c0_85] : memref<3x32xf32, #tpu.memory_space<vmem>>, vector<1x32xf32>
      %cst_86 = arith.constant dense<0.000000e+00> : vector<16xf32>
      %260 = vector.multi_reduction <add>, %257, %cst_86 [1] : vector<16x32xf32> to vector<16xf32>
      %261 = vector.shape_cast %260 : vector<16xf32> to vector<16x1xf32>
      %cst_87 = arith.constant 3.200000e+01 : f32
      %262 = vector.broadcast %cst_87 : f32 to vector<16x1xf32>
      %263 = arith.divf %261, %262 : vector<16x1xf32>
      %264 = vector.broadcast %263 : vector<16x1xf32> to vector<16x32xf32>
      %265 = arith.subf %257, %264 : vector<16x32xf32>
      %266 = arith.mulf %265, %265 : vector<16x32xf32>
      %cst_88 = arith.constant dense<0.000000e+00> : vector<16xf32>
      %267 = vector.multi_reduction <add>, %266, %cst_88 [1] : vector<16x32xf32> to vector<16xf32>
      %268 = vector.shape_cast %267 : vector<16xf32> to vector<16x1xf32>
      %cst_89 = arith.constant 3.200000e+01 : f32
      %269 = vector.broadcast %cst_89 : f32 to vector<16x1xf32>
      %270 = arith.divf %268, %269 : vector<16x1xf32>
      %271 = vector.broadcast %263 : vector<16x1xf32> to vector<16x32xf32>
      %272 = arith.subf %257, %271 : vector<16x32xf32>
      %cst_90 = arith.constant 9.99999974E-6 : f32
      %273 = vector.broadcast %cst_90 : f32 to vector<16x1xf32>
      %274 = arith.addf %270, %273 : vector<16x1xf32>
      %275 = math.rsqrt %274 : vector<16x1xf32>
      %276 = vector.broadcast %275 : vector<16x1xf32> to vector<16x32xf32>
      %277 = arith.mulf %272, %276 : vector<16x32xf32>
      %278 = vector.broadcast %258 : vector<1x32xf32> to vector<16x32xf32>
      %279 = arith.mulf %277, %278 : vector<16x32xf32>
      %280 = vector.broadcast %259 : vector<1x32xf32> to vector<16x32xf32>
      %281 = arith.addf %279, %280 : vector<16x32xf32>
      %c0_91 = arith.constant 0 : index
      %c0_92 = arith.constant 0 : index
      %282 = vector.load %arg6[%c0_91, %c0_92] : memref<16x32xf32, #tpu.memory_space<vmem>>, vector<16x32xf32>
      %283 = arith.addf %281, %282 : vector<16x32xf32>
      %c0_93 = arith.constant 0 : index
      %c0_94 = arith.constant 0 : index
      %284 = vector.load %arg14[%c0_93, %c0_94] : memref<16x32xf32, #tpu.memory_space<vmem>>, vector<16x32xf32>
      tpu.vector_store %arg14[%c0_93, %c0_94], %283 {strides = array<i32>} : memref<16x32xf32, #tpu.memory_space<vmem>>, vector<16x32xf32>,
    } else {
    }
    %c0 = arith.constant 0 : index
    %c0_18 = arith.constant 0 : index
    %63 = vector.load %arg14[%c0, %c0_18] : memref<16x32xf32, #tpu.memory_space<vmem>>, vector<16x32xf32>
    %64 = arith.truncf %63 : vector<16x32xf32> to vector<16x32xbf16>
    %c0_19 = arith.constant 0 : index
    %c0_20 = arith.constant 0 : index
    %c0_21 = arith.constant 0 : index
    %65 = vector.load %arg7[%c0_19, %c0_20, %c0_21] : memref<1x32x96xbf16, #tpu.memory_space<vmem>>, vector<1x32x96xbf16>
    %66 = vector.shape_cast %65 : vector<1x32x96xbf16> to vector<32x96xbf16>
    %cst_22 = arith.constant dense<0.000000e+00> : vector<16x96xf32>
    %67 = tpu.matmul %64, %66, %cst_22 {dimension_numbers = #tpu.dot_dimension_numbers<[1], [0], [0], [1], [0, 0, 1, 1], [], []>} : vector<16x32xbf16>, vector<32x96xbf16>, vector<16x96xf32> -> vector<16x96xf32>
    %c0_23 = arith.constant 0 : index
    %c0_24 = arith.constant 0 : index
    %c0_25 = arith.constant 0 : index
    %68 = vector.load %arg8[%c0_23, %c0_24, %c0_25] : memref<1x1x96xf32, #tpu.memory_space<vmem>>, vector<1x1x96xf32>
    %69 = vector.shape_cast %68 : vector<1x1x96xf32> to vector<1x96xf32>
    %70 = vector.broadcast %69 : vector<1x96xf32> to vector<16x96xf32>
    %71 = arith.addf %67, %70 : vector<16x96xf32>
    %72 = vector.extract_strided_slice %71 {offsets = [0, 0], sizes = [16, 32], strides = [1, 1]} : vector<16x96xf32> to vector<16x32xf32>
    %cst_26 = arith.constant 0.353553385 : f32
    %73 = vector.broadcast %cst_26 : f32 to vector<16x32xf32>
    %74 = arith.mulf %72, %73 : vector<16x32xf32>
    %75 = vector.extract_strided_slice %71 {offsets = [0, 32], sizes = [16, 32], strides = [1, 1]} : vector<16x96xf32> to vector<16x32xf32>
    %76 = vector.extract_strided_slice %71 {offsets = [0, 64], sizes = [16, 32], strides = [1, 1]} : vector<16x96xf32> to vector<16x32xf32>
    %c0_27 = arith.constant 0 : index
    %c0_28 = arith.constant 0 : index
    %c0_29 = arith.constant 0 : index
    %77 = vector.load %arg9[%c0_27, %c0_28, %c0_29] : memref<1x32x32xbf16, #tpu.memory_space<vmem>>, vector<1x32x32xbf16>
    %78 = vector.shape_cast %77 : vector<1x32x32xbf16> to vector<32x32xbf16>
    %79 = vector.extract_strided_slice %74 {offsets = [0, 0], sizes = [16, 8], strides = [1, 1]} : vector<16x32xf32> to vector<16x8xf32>
    %80 = arith.truncf %79 : vector<16x8xf32> to vector<16x8xbf16>
    %81 = vector.extract_strided_slice %75 {offsets = [0, 0], sizes = [16, 8], strides = [1, 1]} : vector<16x32xf32> to vector<16x8xf32>
    %82 = arith.truncf %81 : vector<16x8xf32> to vector<16x8xbf16>
    %83 = vector.extract_strided_slice %76 {offsets = [0, 0], sizes = [16, 8], strides = [1, 1]} : vector<16x32xf32> to vector<16x8xf32>
    %84 = arith.truncf %83 : vector<16x8xf32> to vector<16x8xbf16>
    %cst_30 = arith.constant dense<0.000000e+00> : vector<16x16xf32>
    %85 = tpu.matmul %80, %82, %cst_30 {dimension_numbers = #tpu.dot_dimension_numbers<[1], [1], [0], [0], [0, 0, 1, 0], [], []>} : vector<16x8xbf16>, vector<16x8xbf16>, vector<16x16xf32> -> vector<16x16xf32>
    %86 = arith.addf %85, %59 : vector<16x16xf32>
    %cst_31 = arith.constant dense<0xFF800000> : vector<16xf32>
    %87 = vector.multi_reduction <maximumf>, %86, %cst_31 [1] : vector<16x16xf32> to vector<16xf32>
    %88 = vector.shape_cast %87 : vector<16xf32> to vector<16x1xf32>
    %89 = vector.broadcast %88 : vector<16x1xf32> to vector<16x16xf32>
    %90 = arith.subf %86, %89 : vector<16x16xf32>
    %91 = math.exp %90 : vector<16x16xf32>
    %cst_32 = arith.constant dense<0.000000e+00> : vector<16xf32>
    %92 = vector.multi_reduction <add>, %91, %cst_32 [1] : vector<16x16xf32> to vector<16xf32>
    %93 = vector.shape_cast %92 : vector<16xf32> to vector<16x1xf32>
    %94 = tpu.reciprocal %93 {approx = true} : vector<16x1xf32> -> vector<16x1xf32>
    %95 = vector.broadcast %94 : vector<16x1xf32> to vector<16x16xf32>
    %96 = arith.mulf %91, %95 : vector<16x16xf32>
    %97 = arith.truncf %96 : vector<16x16xf32> to vector<16x16xbf16>
    %cst_33 = arith.constant dense<0.000000e+00> : vector<16x8xf32>
    %98 = tpu.matmul %97, %84, %cst_33 {dimension_numbers = #tpu.dot_dimension_numbers<[1], [0], [0], [1], [0, 0, 1, 1], [], []>} : vector<16x16xbf16>, vector<16x8xbf16>, vector<16x8xf32> -> vector<16x8xf32>
    %99 = arith.truncf %98 : vector<16x8xf32> to vector<16x8xbf16>
    %100 = vector.extract_strided_slice %78 {offsets = [0, 0], sizes = [8, 32], strides = [1, 1]} : vector<32x32xbf16> to vector<8x32xbf16>
    %cst_34 = arith.constant dense<0.000000e+00> : vector<16x32xf32>
    %101 = tpu.matmul %99, %100, %cst_34 {dimension_numbers = #tpu.dot_dimension_numbers<[1], [0], [0], [1], [0, 0, 1, 1], [], []>} : vector<16x8xbf16>, vector<8x32xbf16>, vector<16x32xf32> -> vector<16x32xf32>
    %102 = vector.extract_strided_slice %74 {offsets = [0, 8], sizes = [16, 8], strides = [1, 1]} : vector<16x32xf32> to vector<16x8xf32>
    %103 = arith.truncf %102 : vector<16x8xf32> to vector<16x8xbf16>
    %104 = vector.extract_strided_slice %75 {offsets = [0, 8], sizes = [16, 8], strides = [1, 1]} : vector<16x32xf32> to vector<16x8xf32>
    %105 = arith.truncf %104 : vector<16x8xf32> to vector<16x8xbf16>
    %106 = vector.extract_strided_slice %76 {offsets = [0, 8], sizes = [16, 8], strides = [1, 1]} : vector<16x32xf32> to vector<16x8xf32>
    %107 = arith.truncf %106 : vector<16x8xf32> to vector<16x8xbf16>
    %cst_35 = arith.constant dense<0.000000e+00> : vector<16x16xf32>
    %108 = tpu.matmul %103, %105, %cst_35 {dimension_numbers = #tpu.dot_dimension_numbers<[1], [1], [0], [0], [0, 0, 1, 0], [], []>} : vector<16x8xbf16>, vector<16x8xbf16>, vector<16x16xf32> -> vector<16x16xf32>
    %109 = arith.addf %108, %59 : vector<16x16xf32>
    %cst_36 = arith.constant dense<0xFF800000> : vector<16xf32>
    %110 = vector.multi_reduction <maximumf>, %109, %cst_36 [1] : vector<16x16xf32> to vector<16xf32>
    %111 = vector.shape_cast %110 : vector<16xf32> to vector<16x1xf32>
    %112 = vector.broadcast %111 : vector<16x1xf32> to vector<16x16xf32>
    %113 = arith.subf %109, %112 : vector<16x16xf32>
    %114 = math.exp %113 : vector<16x16xf32>
    %cst_37 = arith.constant dense<0.000000e+00> : vector<16xf32>
    %115 = vector.multi_reduction <add>, %114, %cst_37 [1] : vector<16x16xf32> to vector<16xf32>
    %116 = vector.shape_cast %115 : vector<16xf32> to vector<16x1xf32>
    %117 = tpu.reciprocal %116 {approx = true} : vector<16x1xf32> -> vector<16x1xf32>
    %118 = vector.broadcast %117 : vector<16x1xf32> to vector<16x16xf32>
    %119 = arith.mulf %114, %118 : vector<16x16xf32>
    %120 = arith.truncf %119 : vector<16x16xf32> to vector<16x16xbf16>
    %cst_38 = arith.constant dense<0.000000e+00> : vector<16x8xf32>
    %121 = tpu.matmul %120, %107, %cst_38 {dimension_numbers = #tpu.dot_dimension_numbers<[1], [0], [0], [1], [0, 0, 1, 1], [], []>} : vector<16x16xbf16>, vector<16x8xbf16>, vector<16x8xf32> -> vector<16x8xf32>
    %122 = arith.truncf %121 : vector<16x8xf32> to vector<16x8xbf16>
    %123 = vector.extract_strided_slice %78 {offsets = [8, 0], sizes = [8, 32], strides = [1, 1]} : vector<32x32xbf16> to vector<8x32xbf16>
    %cst_39 = arith.constant dense<0.000000e+00> : vector<16x32xf32>
    %124 = tpu.matmul %122, %123, %cst_39 {dimension_numbers = #tpu.dot_dimension_numbers<[1], [0], [0], [1], [0, 0, 1, 1], [], []>} : vector<16x8xbf16>, vector<8x32xbf16>, vector<16x32xf32> -> vector<16x32xf32>
    %125 = arith.addf %101, %124 : vector<16x32xf32>
    %126 = vector.extract_strided_slice %74 {offsets = [0, 16], sizes = [16, 8], strides = [1, 1]} : vector<16x32xf32> to vector<16x8xf32>
    %127 = arith.truncf %126 : vector<16x8xf32> to vector<16x8xbf16>
    %128 = vector.extract_strided_slice %75 {offsets = [0, 16], sizes = [16, 8], strides = [1, 1]} : vector<16x32xf32> to vector<16x8xf32>
    %129 = arith.truncf %128 : vector<16x8xf32> to vector<16x8xbf16>
    %130 = vector.extract_strided_slice %76 {offsets = [0, 16], sizes = [16, 8], strides = [1, 1]} : vector<16x32xf32> to vector<16x8xf32>
    %131 = arith.truncf %130 : vector<16x8xf32> to vector<16x8xbf16>
    %cst_40 = arith.constant dense<0.000000e+00> : vector<16x16xf32>
    %132 = tpu.matmul %127, %129, %cst_40 {dimension_numbers = #tpu.dot_dimension_numbers<[1], [1], [0], [0], [0, 0, 1, 0], [], []>} : vector<16x8xbf16>, vector<16x8xbf16>, vector<16x16xf32> -> vector<16x16xf32>
    %133 = arith.addf %132, %59 : vector<16x16xf32>
    %cst_41 = arith.constant dense<0xFF800000> : vector<16xf32>
    %134 = vector.multi_reduction <maximumf>, %133, %cst_41 [1] : vector<16x16xf32> to vector<16xf32>
    %135 = vector.shape_cast %134 : vector<16xf32> to vector<16x1xf32>
    %136 = vector.broadcast %135 : vector<16x1xf32> to vector<16x16xf32>
    %137 = arith.subf %133, %136 : vector<16x16xf32>
    %138 = math.exp %137 : vector<16x16xf32>
    %cst_42 = arith.constant dense<0.000000e+00> : vector<16xf32>
    %139 = vector.multi_reduction <add>, %138, %cst_42 [1] : vector<16x16xf32> to vector<16xf32>
    %140 = vector.shape_cast %139 : vector<16xf32> to vector<16x1xf32>
    %141 = tpu.reciprocal %140 {approx = true} : vector<16x1xf32> -> vector<16x1xf32>
    %142 = vector.broadcast %141 : vector<16x1xf32> to vector<16x16xf32>
    %143 = arith.mulf %138, %142 : vector<16x16xf32>
    %144 = arith.truncf %143 : vector<16x16xf32> to vector<16x16xbf16>
    %cst_43 = arith.constant dense<0.000000e+00> : vector<16x8xf32>
    %145 = tpu.matmul %144, %131, %cst_43 {dimension_numbers = #tpu.dot_dimension_numbers<[1], [0], [0], [1], [0, 0, 1, 1], [], []>} : vector<16x16xbf16>, vector<16x8xbf16>, vector<16x8xf32> -> vector<16x8xf32>
    %146 = arith.truncf %145 : vector<16x8xf32> to vector<16x8xbf16>
    %147 = vector.extract_strided_slice %78 {offsets = [16, 0], sizes = [8, 32], strides = [1, 1]} : vector<32x32xbf16> to vector<8x32xbf16>
    %cst_44 = arith.constant dense<0.000000e+00> : vector<16x32xf32>
    %148 = tpu.matmul %146, %147, %cst_44 {dimension_numbers = #tpu.dot_dimension_numbers<[1], [0], [0], [1], [0, 0, 1, 1], [], []>} : vector<16x8xbf16>, vector<8x32xbf16>, vector<16x32xf32> -> vector<16x32xf32>
    %149 = arith.addf %125, %148 : vector<16x32xf32>
    %150 = vector.extract_strided_slice %74 {offsets = [0, 24], sizes = [16, 8], strides = [1, 1]} : vector<16x32xf32> to vector<16x8xf32>
    %151 = arith.truncf %150 : vector<16x8xf32> to vector<16x8xbf16>
    %152 = vector.extract_strided_slice %75 {offsets = [0, 24], sizes = [16, 8], strides = [1, 1]} : vector<16x32xf32> to vector<16x8xf32>
    %153 = arith.truncf %152 : vector<16x8xf32> to vector<16x8xbf16>
    %154 = vector.extract_strided_slice %76 {offsets = [0, 24], sizes = [16, 8], strides = [1, 1]} : vector<16x32xf32> to vector<16x8xf32>
    %155 = arith.truncf %154 : vector<16x8xf32> to vector<16x8xbf16>
    %cst_45 = arith.constant dense<0.000000e+00> : vector<16x16xf32>
    %156 = tpu.matmul %151, %153, %cst_45 {dimension_numbers = #tpu.dot_dimension_numbers<[1], [1], [0], [0], [0, 0, 1, 0], [], []>} : vector<16x8xbf16>, vector<16x8xbf16>, vector<16x16xf32> -> vector<16x16xf32>
    %157 = arith.addf %156, %59 : vector<16x16xf32>
    %cst_46 = arith.constant dense<0xFF800000> : vector<16xf32>
    %158 = vector.multi_reduction <maximumf>, %157, %cst_46 [1] : vector<16x16xf32> to vector<16xf32>
    %159 = vector.shape_cast %158 : vector<16xf32> to vector<16x1xf32>
    %160 = vector.broadcast %159 : vector<16x1xf32> to vector<16x16xf32>
    %161 = arith.subf %157, %160 : vector<16x16xf32>
    %162 = math.exp %161 : vector<16x16xf32>
    %cst_47 = arith.constant dense<0.000000e+00> : vector<16xf32>
    %163 = vector.multi_reduction <add>, %162, %cst_47 [1] : vector<16x16xf32> to vector<16xf32>
    %164 = vector.shape_cast %163 : vector<16xf32> to vector<16x1xf32>
    %165 = tpu.reciprocal %164 {approx = true} : vector<16x1xf32> -> vector<16x1xf32>
    %166 = vector.broadcast %165 : vector<16x1xf32> to vector<16x16xf32>
    %167 = arith.mulf %162, %166 : vector<16x16xf32>
    %168 = arith.truncf %167 : vector<16x16xf32> to vector<16x16xbf16>
    %cst_48 = arith.constant dense<0.000000e+00> : vector<16x8xf32>
    %169 = tpu.matmul %168, %155, %cst_48 {dimension_numbers = #tpu.dot_dimension_numbers<[1], [0], [0], [1], [0, 0, 1, 1], [], []>} : vector<16x16xbf16>, vector<16x8xbf16>, vector<16x8xf32> -> vector<16x8xf32>
    %170 = arith.truncf %169 : vector<16x8xf32> to vector<16x8xbf16>
    %171 = vector.extract_strided_slice %78 {offsets = [24, 0], sizes = [8, 32], strides = [1, 1]} : vector<32x32xbf16> to vector<8x32xbf16>
    %cst_49 = arith.constant dense<0.000000e+00> : vector<16x32xf32>
    %172 = tpu.matmul %170, %171, %cst_49 {dimension_numbers = #tpu.dot_dimension_numbers<[1], [0], [0], [1], [0, 0, 1, 1], [], []>} : vector<16x8xbf16>, vector<8x32xbf16>, vector<16x32xf32> -> vector<16x32xf32>
    %173 = arith.addf %149, %172 : vector<16x32xf32>
    %c0_50 = arith.constant 0 : index
    %c0_51 = arith.constant 0 : index
    %c0_52 = arith.constant 0 : index
    %174 = vector.load %arg13[%c0_50, %c0_51, %c0_52] : memref<1x6x32xf32, #tpu.memory_space<vmem>>, vector<1x6x32xf32>
    %175 = vector.shape_cast %174 : vector<1x6x32xf32> to vector<6x32xf32>
    %176 = vector.extract_strided_slice %175 {offsets = [0, 0], sizes = [1, 32], strides = [1, 1]} : vector<6x32xf32> to vector<1x32xf32>
    %177 = vector.extract_strided_slice %175 {offsets = [1, 0], sizes = [1, 32], strides = [1, 1]} : vector<6x32xf32> to vector<1x32xf32>
    %178 = vector.extract_strided_slice %175 {offsets = [2, 0], sizes = [1, 32], strides = [1, 1]} : vector<6x32xf32> to vector<1x32xf32>
    %179 = vector.extract_strided_slice %175 {offsets = [3, 0], sizes = [1, 32], strides = [1, 1]} : vector<6x32xf32> to vector<1x32xf32>
    %180 = vector.extract_strided_slice %175 {offsets = [4, 0], sizes = [1, 32], strides = [1, 1]} : vector<6x32xf32> to vector<1x32xf32>
    %181 = vector.extract_strided_slice %175 {offsets = [5, 0], sizes = [1, 32], strides = [1, 1]} : vector<6x32xf32> to vector<1x32xf32>
    %182 = vector.broadcast %176 : vector<1x32xf32> to vector<16x32xf32>
    %183 = arith.addf %173, %182 : vector<16x32xf32>
    %184 = arith.addf %183, %63 : vector<16x32xf32>
    %cst_53 = arith.constant dense<0.000000e+00> : vector<16xf32>
    %185 = vector.multi_reduction <add>, %184, %cst_53 [1] : vector<16x32xf32> to vector<16xf32>
    %186 = vector.shape_cast %185 : vector<16xf32> to vector<16x1xf32>
    %cst_54 = arith.constant 3.200000e+01 : f32
    %187 = vector.broadcast %cst_54 : f32 to vector<16x1xf32>
    %188 = arith.divf %186, %187 : vector<16x1xf32>
    %189 = vector.broadcast %188 : vector<16x1xf32> to vector<16x32xf32>
    %190 = arith.subf %184, %189 : vector<16x32xf32>
    %191 = arith.mulf %190, %190 : vector<16x32xf32>
    %cst_55 = arith.constant dense<0.000000e+00> : vector<16xf32>
    %192 = vector.multi_reduction <add>, %191, %cst_55 [1] : vector<16x32xf32> to vector<16xf32>
    %193 = vector.shape_cast %192 : vector<16xf32> to vector<16x1xf32>
    %cst_56 = arith.constant 3.200000e+01 : f32
    %194 = vector.broadcast %cst_56 : f32 to vector<16x1xf32>
    %195 = arith.divf %193, %194 : vector<16x1xf32>
    %196 = vector.broadcast %188 : vector<16x1xf32> to vector<16x32xf32>
    %197 = arith.subf %184, %196 : vector<16x32xf32>
    %cst_57 = arith.constant 9.99999974E-6 : f32
    %198 = vector.broadcast %cst_57 : f32 to vector<16x1xf32>
    %199 = arith.addf %195, %198 : vector<16x1xf32>
    %200 = math.rsqrt %199 : vector<16x1xf32>
    %201 = vector.broadcast %200 : vector<16x1xf32> to vector<16x32xf32>
    %202 = arith.mulf %197, %201 : vector<16x32xf32>
    %203 = vector.broadcast %177 : vector<1x32xf32> to vector<16x32xf32>
    %204 = arith.mulf %202, %203 : vector<16x32xf32>
    %205 = vector.broadcast %178 : vector<1x32xf32> to vector<16x32xf32>
    %206 = arith.addf %204, %205 : vector<16x32xf32>
    %207 = vector.broadcast %54 : vector<16x1xf32> to vector<16x32xf32>
    %208 = arith.mulf %206, %207 : vector<16x32xf32>
    %209 = arith.truncf %208 : vector<16x32xf32> to vector<16x32xbf16>
    %c0_58 = arith.constant 0 : index
    %c0_59 = arith.constant 0 : index
    %c0_60 = arith.constant 0 : index
    %210 = vector.load %arg10[%c0_58, %c0_59, %c0_60] : memref<1x32x64xbf16, #tpu.memory_space<vmem>>, vector<1x32x64xbf16>
    %211 = vector.shape_cast %210 : vector<1x32x64xbf16> to vector<32x64xbf16>
    %cst_61 = arith.constant dense<0.000000e+00> : vector<16x64xf32>
    %212 = tpu.matmul %209, %211, %cst_61 {dimension_numbers = #tpu.dot_dimension_numbers<[1], [0], [0], [1], [0, 0, 1, 1], [], []>} : vector<16x32xbf16>, vector<32x64xbf16>, vector<16x64xf32> -> vector<16x64xf32>
    %c0_62 = arith.constant 0 : index
    %c0_63 = arith.constant 0 : index
    %c0_64 = arith.constant 0 : index
    %213 = vector.load %arg11[%c0_62, %c0_63, %c0_64] : memref<1x1x64xf32, #tpu.memory_space<vmem>>, vector<1x1x64xf32>
    %214 = vector.shape_cast %213 : vector<1x1x64xf32> to vector<1x64xf32>
    %215 = vector.broadcast %214 : vector<1x64xf32> to vector<16x64xf32>
    %216 = arith.addf %212, %215 : vector<16x64xf32>
    %cst_65 = arith.constant 0.000000e+00 : f32
    %217 = vector.broadcast %cst_65 : f32 to vector<16x64xf32>
    %218 = arith.maximumf %216, %217 : vector<16x64xf32>
    %219 = arith.truncf %218 : vector<16x64xf32> to vector<16x64xbf16>
    %c0_66 = arith.constant 0 : index
    %c0_67 = arith.constant 0 : index
    %c0_68 = arith.constant 0 : index
    %220 = vector.load %arg12[%c0_66, %c0_67, %c0_68] : memref<1x64x32xbf16, #tpu.memory_space<vmem>>, vector<1x64x32xbf16>
    %221 = vector.shape_cast %220 : vector<1x64x32xbf16> to vector<64x32xbf16>
    %cst_69 = arith.constant dense<0.000000e+00> : vector<16x32xf32>
    %222 = tpu.matmul %219, %221, %cst_69 {dimension_numbers = #tpu.dot_dimension_numbers<[1], [0], [0], [1], [0, 0, 1, 1], [], []>} : vector<16x64xbf16>, vector<64x32xbf16>, vector<16x32xf32> -> vector<16x32xf32>
    %223 = vector.broadcast %179 : vector<1x32xf32> to vector<16x32xf32>
    %224 = arith.addf %222, %223 : vector<16x32xf32>
    %225 = arith.addf %224, %208 : vector<16x32xf32>
    %cst_70 = arith.constant dense<0.000000e+00> : vector<16xf32>
    %226 = vector.multi_reduction <add>, %225, %cst_70 [1] : vector<16x32xf32> to vector<16xf32>
    %227 = vector.shape_cast %226 : vector<16xf32> to vector<16x1xf32>
    %cst_71 = arith.constant 3.200000e+01 : f32
    %228 = vector.broadcast %cst_71 : f32 to vector<16x1xf32>
    %229 = arith.divf %227, %228 : vector<16x1xf32>
    %230 = vector.broadcast %229 : vector<16x1xf32> to vector<16x32xf32>
    %231 = arith.subf %225, %230 : vector<16x32xf32>
    %232 = arith.mulf %231, %231 : vector<16x32xf32>
    %cst_72 = arith.constant dense<0.000000e+00> : vector<16xf32>
    %233 = vector.multi_reduction <add>, %232, %cst_72 [1] : vector<16x32xf32> to vector<16xf32>
    %234 = vector.shape_cast %233 : vector<16xf32> to vector<16x1xf32>
    %cst_73 = arith.constant 3.200000e+01 : f32
    %235 = vector.broadcast %cst_73 : f32 to vector<16x1xf32>
    %236 = arith.divf %234, %235 : vector<16x1xf32>
    %237 = vector.broadcast %229 : vector<16x1xf32> to vector<16x32xf32>
    %238 = arith.subf %225, %237 : vector<16x32xf32>
    %cst_74 = arith.constant 9.99999974E-6 : f32
    %239 = vector.broadcast %cst_74 : f32 to vector<16x1xf32>
    %240 = arith.addf %236, %239 : vector<16x1xf32>
    %241 = math.rsqrt %240 : vector<16x1xf32>
    %242 = vector.broadcast %241 : vector<16x1xf32> to vector<16x32xf32>
    %243 = arith.mulf %238, %242 : vector<16x32xf32>
    %244 = vector.broadcast %180 : vector<1x32xf32> to vector<16x32xf32>
    %245 = arith.mulf %243, %244 : vector<16x32xf32>
    %246 = vector.broadcast %181 : vector<1x32xf32> to vector<16x32xf32>
    %247 = arith.addf %245, %246 : vector<16x32xf32>
    %248 = vector.broadcast %54 : vector<16x1xf32> to vector<16x32xf32>
    %249 = arith.mulf %247, %248 : vector<16x32xf32>
    %c0_75 = arith.constant 0 : index
    %c0_76 = arith.constant 0 : index
    %250 = vector.load %arg14[%c0_75, %c0_76] : memref<16x32xf32, #tpu.memory_space<vmem>>, vector<16x32xf32>
    tpu.vector_store %arg14[%c0_75, %c0_76], %249 {strides = array<i32>} : memref<16x32xf32, #tpu.memory_space<vmem>>, vector<16x32xf32>,
    return
  }
  func.func @transform_0(%arg0: i32, %arg1: i32, %arg2: memref<2xi32, #tpu.memory_space<smem>>) -> (i32, i32) {
    %c0_i32 = arith.constant 0 : i32
    %c0_i32_0 = arith.constant 0 : i32
    return %arg0, %c0_i32 : i32, i32
  }
  func.func @transform_1(%arg0: i32, %arg1: i32, %arg2: memref<2xi32, #tpu.memory_space<smem>>) -> (i32, i32) {
    %c0_i32 = arith.constant 0 : i32
    %c0_i32_0 = arith.constant 0 : i32
    %c0_i32_1 = arith.constant 0 : i32
    return %c0_i32, %c0_i32_0 : i32, i32
  }
  func.func @transform_2(%arg0: i32, %arg1: i32, %arg2: memref<2xi32, #tpu.memory_space<smem>>) -> (i32, i32) {
    %c0_i32 = arith.constant 0 : i32
    %c0_i32_0 = arith.constant 0 : i32
    %c0_i32_1 = arith.constant 0 : i32
    return %c0_i32, %c0_i32_0 : i32, i32
  }
  func.func @transform_3(%arg0: i32, %arg1: i32, %arg2: memref<2xi32, #tpu.memory_space<smem>>) -> (i32, i32) {
    %c0_i32 = arith.constant 0 : i32
    %c0_i32_0 = arith.constant 0 : i32
    %c0_i32_1 = arith.constant 0 : i32
    return %c0_i32, %c0_i32_0 : i32, i32
  }
  func.func @transform_4(%arg0: i32, %arg1: i32, %arg2: memref<2xi32, #tpu.memory_space<smem>>) -> (i32, i32, i32) {
    %c0_i32 = arith.constant 0 : i32
    %c0_i32_0 = arith.constant 0 : i32
    %c0_i32_1 = arith.constant 0 : i32
    return %arg1, %c0_i32, %c0_i32_0 : i32, i32, i32
  }
  func.func @transform_5(%arg0: i32, %arg1: i32, %arg2: memref<2xi32, #tpu.memory_space<smem>>) -> (i32, i32, i32) {
    %c0_i32 = arith.constant 0 : i32
    %c0_i32_0 = arith.constant 0 : i32
    %c0_i32_1 = arith.constant 0 : i32
    return %arg1, %c0_i32, %c0_i32_0 : i32, i32, i32
  }
  func.func @transform_6(%arg0: i32, %arg1: i32, %arg2: memref<2xi32, #tpu.memory_space<smem>>) -> (i32, i32, i32) {
    %c0_i32 = arith.constant 0 : i32
    %c0_i32_0 = arith.constant 0 : i32
    %c0_i32_1 = arith.constant 0 : i32
    return %arg1, %c0_i32, %c0_i32_0 : i32, i32, i32
  }
  func.func @transform_7(%arg0: i32, %arg1: i32, %arg2: memref<2xi32, #tpu.memory_space<smem>>) -> (i32, i32, i32) {
    %c0_i32 = arith.constant 0 : i32
    %c0_i32_0 = arith.constant 0 : i32
    %c0_i32_1 = arith.constant 0 : i32
    return %arg1, %c0_i32, %c0_i32_0 : i32, i32, i32
  }
  func.func @transform_8(%arg0: i32, %arg1: i32, %arg2: memref<2xi32, #tpu.memory_space<smem>>) -> (i32, i32, i32) {
    %c0_i32 = arith.constant 0 : i32
    %c0_i32_0 = arith.constant 0 : i32
    %c0_i32_1 = arith.constant 0 : i32
    return %arg1, %c0_i32, %c0_i32_0 : i32, i32, i32
  }
  func.func @transform_9(%arg0: i32, %arg1: i32, %arg2: memref<2xi32, #tpu.memory_space<smem>>) -> (i32, i32, i32) {
    %c0_i32 = arith.constant 0 : i32
    %c0_i32_0 = arith.constant 0 : i32
    %c0_i32_1 = arith.constant 0 : i32
    return %arg1, %c0_i32, %c0_i32_0 : i32, i32, i32
  }
  func.func @transform_10(%arg0: i32, %arg1: i32, %arg2: memref<2xi32, #tpu.memory_space<smem>>) -> (i32, i32, i32) {
    %c0_i32 = arith.constant 0 : i32
    %c0_i32_0 = arith.constant 0 : i32
    %c0_i32_1 = arith.constant 0 : i32
    return %arg1, %c0_i32, %c0_i32_0 : i32, i32, i32
  }
  func.func @transform_11(%arg0: i32, %arg1: i32, %arg2: memref<2xi32, #tpu.memory_space<smem>>) -> (i32, i32) {
    %c0_i32 = arith.constant 0 : i32
    %c0_i32_0 = arith.constant 0 : i32
    return %arg0, %c0_i32 : i32, i32
  }
}

</mosaic_0001>

<llo_original>
// kernel: tpu_custom_call.1
$region0: #{tpu_custom_call.1}
  #allocation0 [shape = 'u32[]', space=smem, size = 0x4, offset = 0x4, fixed_abs, tag = 'smem constant byte address 0x4 - core index']
  #allocation1 [shape = 'u32[144,128]{1,0:T(1,128)}', space=vmem, size = 0x12000, scoped, tag = 'internal scratch']
  #allocation2 [shape = 's32[1]{0}', space=sflag, size = 0x4, scoped, tag = 'scoped memory for tpu_custom_call.1']
  #allocation3 [shape = 'u8[512]{0}', space=smem, size = 0x200, scoped, tag = 'prefetched SMEM operand 0']
  %s0 = inlined_call_operand.hbm [shape: s32[2], index: 0, kind: input, shape index: {}]
  %s1 = inlined_call_operand.hbm [shape: f32[16,16], index: 1, kind: input, shape index: {}]
  %s2 = inlined_call_operand.hbm [shape: bf16[16,32], index: 2, kind: input, shape index: {}]
  %s3 = inlined_call_operand.vmem [shape: f32[3,32], index: 3, kind: input, shape index: {}]
  %s4 = inlined_call_operand.hbm [shape: f32[16,32], index: 4, kind: input, shape index: {}]
  %s5 = inlined_call_operand.vmem [shape: bf16[2,32,96], index: 5, kind: input, shape index: {}]
  %s6 = inlined_call_operand.hbm [shape: f32[2,1,96], index: 6, kind: input, shape index: {}]
  %s7 = inlined_call_operand.vmem [shape: bf16[2,32,32], index: 7, kind: input, shape index: {}]
  %s8 = inlined_call_operand.vmem [shape: bf16[2,32,64], index: 8, kind: input, shape index: {}]
  %s9 = inlined_call_operand.hbm [shape: f32[2,1,64], index: 9, kind: input, shape index: {}]
  %s10 = inlined_call_operand.vmem [shape: bf16[2,64,32], index: 10, kind: input, shape index: {}]
  %s11 = inlined_call_operand.vmem [shape: f32[2,6,32], index: 11, kind: input, shape index: {}]
  %s12 = inlined_call_operand.hbm [shape: f32[16,32], index: 12, kind: output, shape index: {}]
  %s13 = sld [smem:[#allocation0]]
  $region101: #{tpu_custom_call.1} parent=0
    _
  %s15 = ssub.s32 1, %s13
  %s16 = scalar_select 0, %s15, %s13
  %18 = dma.hbm_to_smem %s0, 16, [#allocation3], [#allocation2]
  %19 = dma.done [#allocation2], 16
  %20 = sfence
  $region1: #{tpu_custom_call.1} parent=0
    #allocation4 [shape = 'u8[8192]{0}', space=vmem, size = 0x2000, scoped, tag = 'input window, operand 1, single buffered']
    #allocation5 [shape = 's32[2]{0}', space=sflag, size = 0x8, scoped, tag = 'scoped memory for tpu_custom_call.1']
    #allocation6 [shape = 's32[2]{0}', space=sflag, size = 0x8, scoped, tag = 'scoped memory for tpu_custom_call.1']
    #allocation7 [shape = 'u8[4096]{0}', space=vmem, size = 0x1000, scoped, tag = 'input window, operand 2, single buffered']
    #allocation8 [shape = 's32[1]{0}', space=sflag, size = 0x4, scoped, tag = 'scoped memory for tpu_custom_call.1']
    #allocation9 [shape = 'u8[8192]{0}', space=vmem, size = 0x2000, scoped, tag = 'input window, operand 4, single buffered']
    #allocation10 [shape = 'u8[1024]{0}', space=vmem, size = 0x400, scoped, tag = 'input window, operand 6']
    #allocation11 [shape = 's32[2]{0}', space=sflag, size = 0x8, scoped, tag = 'scoped memory for tpu_custom_call.1']
    #allocation12 [shape = 'u8[1024]{0}', space=vmem, size = 0x400, scoped, tag = 'input window, operand 9']
    #allocation13 [shape = 'u8[8192]{0}', space=vmem, size = 0x2000, scoped, tag = 'output window, operand 0, single buffered']
    %21 = vsyncpa [#allocation5], 0
    %22 = vsyncpa [#allocation8], 0
    %23 = vsyncpa [#allocation11], 0
    %s24 = scalar_lea.sflag [#allocation11], 1
    %25 = vsyncpa %s24, 0
    %26 = vsyncpa [#allocation6], 0
    loop: start=0, step=1, limit=4
    $region2: #{tpu_custom_call.1} parent=1 // loop_pre_header
      _
    $region3: #{tpu_custom_call.1} parent=1 // loop_header
      %s28 = sphi 0, %s32
      %p29 = scmp.ge.s32.totalorder %s28, 4
      %s35 = sphi 0, %s47
      %s36 = sphi 0, %s43
      %s37 = sphi 0, %s35
      %s38 = sphi 0, %s36
      %s39 = sphi 0, %s37
      %s40 = sphi 0, %s38
      %s50 = sphi 0, %s52
      %s53 = sphi 0, %s50
      %s54 = sphi 0, %s53
      %s70 = sphi 0, %s54
      %s74 = sphi 0, %s74
      %s76 = sphi 0, %s74
      %s77 = sphi 0, %s76
      %s91 = sphi 0, %s77
      %s95 = sphi 0, %s95
      %s97 = sphi 0, %s95
      %s98 = sphi 0, %s97
      %s112 = sphi 0, %s98
      %s116 = sphi 0, %s116
      %s118 = sphi 0, %s116
      %s119 = sphi 0, %s118
      %s133 = sphi 0, %s119
      %s139 = sphi 0, %s141
      %s142 = sphi 0, %s139
      %s143 = sphi 0, %s142
      %s159 = sphi 0, %s143
      %s165 = sphi 0, %s167
      %s168 = sphi 0, %s165
      %s169 = sphi 0, %s168
      %s185 = sphi 0, %s169
      %s191 = sphi 0, %s193
      %s194 = sphi 0, %s191
      %s195 = sphi 0, %s194
      %s211 = sphi 0, %s195
      %s217 = sphi 0, %s219
      %s220 = sphi 0, %s217
      %s221 = sphi 0, %s220
      %s237 = sphi 0, %s221
      %s243 = sphi 0, %s245
      %s246 = sphi 0, %s243
      %s247 = sphi 0, %s246
      %s263 = sphi 0, %s247
      %s269 = sphi 0, %s271
      %s272 = sphi 0, %s269
      %s273 = sphi 0, %s272
      %s289 = sphi 0, %s273
      %s295 = sphi 0, %s297
      %s298 = sphi 0, %s295
      %s299 = sphi 0, %s298
      %s315 = sphi 0, %s299
      %s321 = sphi 0, %s323
      %s324 = sphi 0, %s321
      %s325 = sphi 0, %s324
      %s341 = sphi 0, %s325
    $region4: #{tpu_custom_call.1} parent=1 // loop_header_branch
      %31 = sbr.rel (%p29) target = $region8
    $region5: #{tpu_custom_call.1} parent=1 // loop_body
      %s33 = ssub.s32 %s28, 1
      %s34 = ssub.s32 %s28, 2
      %s41 = sadd.s32 1, %s36
      %p42 = scmp.ge.s32.totalorder %s41, 2
      %s43 = scalar_select %p42, 0, %s41
      %s44 = sadd.s32 1, %s35
      %s45 = scalar_select %p42, %s44, %s35
      %p46 = scmp.ge.s32.totalorder %s45, 1
      %s47 = scalar_select %p46, 0, %s45
      %s48 = ssub.s32 %s35, %s47
      %p49 = scmp.eq.s32.totalorder %s48, 0
      %s51 = sadd.s32 %s50, 1
      %s52 = scalar_select %p49, %s50, %s51
      %p55 = pneg %p49
      %p56 = scmp.eq.s32.totalorder %s28, 1
      %p57 = por %p55, %p56
      %p58 = scmp.ne.s32.totalorder %s50, %s53
      %p59 = scmp.eq.s32.totalorder %s28, 0
      %p60 = por %p58, %p59
      %p61 = scmp.ne.s32.totalorder %s50, %s53
      %p62 = scmp.eq.s32.totalorder %s33, 1
      %p63 = por %p61, %p62
      %p64 = scmp.ne.s32.totalorder %s53, %s54
      %p65 = scmp.eq.s32.totalorder %s33, 0
      %p66 = por %p64, %p65
      %p67 = scmp.ne.s32.totalorder %s53, %s54
      %p68 = scmp.eq.s32.totalorder %s34, 1
      %p69 = por %p67, %p68
      %p71 = scmp.ne.s32.totalorder %s54, %s70
      %p72 = scmp.eq.s32.totalorder %s34, 0
      %p73 = por %p71, %p72
      %s75 = sadd.s32 %s74, 1
      %p78 = scmp.eq.s32.totalorder %s28, 1
      %p79 = scmp.ne.s32.totalorder %s74, %s76
      %p80 = scmp.eq.s32.totalorder %s28, 0
      %p81 = por %p79, %p80
      %p82 = scmp.ne.s32.totalorder %s74, %s76
      %p83 = scmp.eq.s32.totalorder %s33, 1
      %p84 = por %p82, %p83
      %p85 = scmp.ne.s32.totalorder %s76, %s77
      %p86 = scmp.eq.s32.totalorder %s33, 0
      %p87 = por %p85, %p86
      %p88 = scmp.ne.s32.totalorder %s76, %s77
      %p89 = scmp.eq.s32.totalorder %s34, 1
      %p90 = por %p88, %p89
      %p92 = scmp.ne.s32.totalorder %s77, %s91
      %p93 = scmp.eq.s32.totalorder %s34, 0
      %p94 = por %p92, %p93
      %s96 = sadd.s32 %s95, 1
      %p99 = scmp.eq.s32.totalorder %s28, 1
      %p100 = scmp.ne.s32.totalorder %s95, %s97
      %p101 = scmp.eq.s32.totalorder %s28, 0
      %p102 = por %p100, %p101
      %p103 = scmp.ne.s32.totalorder %s95, %s97
      %p104 = scmp.eq.s32.totalorder %s33, 1
      %p105 = por %p103, %p104
      %p106 = scmp.ne.s32.totalorder %s97, %s98
      %p107 = scmp.eq.s32.totalorder %s33, 0
      %p108 = por %p106, %p107
      %p109 = scmp.ne.s32.totalorder %s97, %s98
      %p110 = scmp.eq.s32.totalorder %s34, 1
      %p111 = por %p109, %p110
      %p113 = scmp.ne.s32.totalorder %s98, %s112
      %p114 = scmp.eq.s32.totalorder %s34, 0
      %p115 = por %p113, %p114
      %s117 = sadd.s32 %s116, 1
      %p120 = scmp.eq.s32.totalorder %s28, 1
      %p121 = scmp.ne.s32.totalorder %s116, %s118
      %p122 = scmp.eq.s32.totalorder %s28, 0
      %p123 = por %p121, %p122
      %p124 = scmp.ne.s32.totalorder %s116, %s118
      %p125 = scmp.eq.s32.totalorder %s33, 1
      %p126 = por %p124, %p125
      %p127 = scmp.ne.s32.totalorder %s118, %s119
      %p128 = scmp.eq.s32.totalorder %s33, 0
      %p129 = por %p127, %p128
      %p130 = scmp.ne.s32.totalorder %s118, %s119
      %p131 = scmp.eq.s32.totalorder %s34, 1
      %p132 = por %p130, %p131
      %p134 = scmp.ne.s32.totalorder %s119, %s133
      %p135 = scmp.eq.s32.totalorder %s34, 0
      %p136 = por %p134, %p135
      %s137 = ssub.s32 %s36, %s43
      %p138 = scmp.eq.s32.totalorder %s137, 0
      %s140 = sadd.s32 %s139, 1
      %s141 = scalar_select %p138, %s139, %s140
      %p144 = pneg %p138
      %p145 = scmp.eq.s32.totalorder %s28, 1
      %p146 = por %p144, %p145
      %p147 = scmp.ne.s32.totalorder %s139, %s142
      %p148 = scmp.eq.s32.totalorder %s28, 0
      %p149 = por %p147, %p148
      %p150 = scmp.ne.s32.totalorder %s139, %s142
      %p151 = scmp.eq.s32.totalorder %s33, 1
      %p152 = por %p150, %p151
      %p153 = scmp.ne.s32.totalorder %s142, %s143
      %p154 = scmp.eq.s32.totalorder %s33, 0
      %p155 = por %p153, %p154
      %p156 = scmp.ne.s32.totalorder %s142, %s143
      %p157 = scmp.eq.s32.totalorder %s34, 1
      %p158 = por %p156, %p157
      %p160 = scmp.ne.s32.totalorder %s143, %s159
      %p161 = scmp.eq.s32.totalorder %s34, 0
      %p162 = por %p160, %p161
      %s163 = ssub.s32 %s36, %s43
      %p164 = scmp.eq.s32.totalorder %s163, 0
      %s166 = sadd.s32 %s165, 1
      %s167 = scalar_select %p164, %s165, %s166
      %p170 = pneg %p164
      %p171 = scmp.eq.s32.totalorder %s28, 1
      %p172 = por %p170, %p171
      %p173 = scmp.ne.s32.totalorder %s165, %s168
      %p174 = scmp.eq.s32.totalorder %s28, 0
      %p175 = por %p173, %p174
      %p176 = scmp.ne.s32.totalorder %s165, %s168
      %p177 = scmp.eq.s32.totalorder %s33, 1
      %p178 = por %p176, %p177
      %p179 = scmp.ne.s32.totalorder %s168, %s169
      %p180 = scmp.eq.s32.totalorder %s33, 0
      %p181 = por %p179, %p180
      %p182 = scmp.ne.s32.totalorder %s168, %s169
      %p183 = scmp.eq.s32.totalorder %s34, 1
      %p184 = por %p182, %p183
      %p186 = scmp.ne.s32.totalorder %s169, %s185
      %p187 = scmp.eq.s32.totalorder %s34, 0
      %p188 = por %p186, %p187
      %s189 = ssub.s32 %s36, %s43
      %p190 = scmp.eq.s32.totalorder %s189, 0
      %s192 = sadd.s32 %s191, 1
      %s193 = scalar_select %p190, %s191, %s192
      %p196 = pneg %p190
      %p197 = scmp.eq.s32.totalorder %s28, 1
      %p198 = por %p196, %p197
      %p199 = scmp.ne.s32.totalorder %s191, %s194
      %p200 = scmp.eq.s32.totalorder %s28, 0
      %p201 = por %p199, %p200
      %p202 = scmp.ne.s32.totalorder %s191, %s194
      %p203 = scmp.eq.s32.totalorder %s33, 1
      %p204 = por %p202, %p203
      %p205 = scmp.ne.s32.totalorder %s194, %s195
      %p206 = scmp.eq.s32.totalorder %s33, 0
      %p207 = por %p205, %p206
      %p208 = scmp.ne.s32.totalorder %s194, %s195
      %p209 = scmp.eq.s32.totalorder %s34, 1
      %p210 = por %p208, %p209
      %p212 = scmp.ne.s32.totalorder %s195, %s211
      %p213 = scmp.eq.s32.totalorder %s34, 0
      %p214 = por %p212, %p213
      %s215 = ssub.s32 %s36, %s43
      %p216 = scmp.eq.s32.totalorder %s215, 0
      %s218 = sadd.s32 %s217, 1
      %s219 = scalar_select %p216, %s217, %s218
      %p222 = pneg %p216
      %p223 = scmp.eq.s32.totalorder %s28, 1
      %p224 = por %p222, %p223
      %p225 = scmp.ne.s32.totalorder %s217, %s220
      %p226 = scmp.eq.s32.totalorder %s28, 0
      %p227 = por %p225, %p226
      %p228 = scmp.ne.s32.totalorder %s217, %s220
      %p229 = scmp.eq.s32.totalorder %s33, 1
      %p230 = por %p228, %p229
      %p231 = scmp.ne.s32.totalorder %s220, %s221
      %p232 = scmp.eq.s32.totalorder %s33, 0
      %p233 = por %p231, %p232
      %p234 = scmp.ne.s32.totalorder %s220, %s221
      %p235 = scmp.eq.s32.totalorder %s34, 1
      %p236 = por %p234, %p235
      %p238 = scmp.ne.s32.totalorder %s221, %s237
      %p239 = scmp.eq.s32.totalorder %s34, 0
      %p240 = por %p238, %p239
      %s241 = ssub.s32 %s36, %s43
      %p242 = scmp.eq.s32.totalorder %s241, 0
      %s244 = sadd.s32 %s243, 1
      %s245 = scalar_select %p242, %s243, %s244
      %p248 = pneg %p242
      %p249 = scmp.eq.s32.totalorder %s28, 1
      %p250 = por %p248, %p249
      %p251 = scmp.ne.s32.totalorder %s243, %s246
      %p252 = scmp.eq.s32.totalorder %s28, 0
      %p253 = por %p251, %p252
      %p254 = scmp.ne.s32.totalorder %s243, %s246
      %p255 = scmp.eq.s32.totalorder %s33, 1
      %p256 = por %p254, %p255
      %p257 = scmp.ne.s32.totalorder %s246, %s247
      %p258 = scmp.eq.s32.totalorder %s33, 0
      %p259 = por %p257, %p258
      %p260 = scmp.ne.s32.totalorder %s246, %s247
      %p261 = scmp.eq.s32.totalorder %s34, 1
      %p262 = por %p260, %p261
      %p264 = scmp.ne.s32.totalorder %s247, %s263
      %p265 = scmp.eq.s32.totalorder %s34, 0
      %p266 = por %p264, %p265
      %s267 = ssub.s32 %s36, %s43
      %p268 = scmp.eq.s32.totalorder %s267, 0
      %s270 = sadd.s32 %s269, 1
      %s271 = scalar_select %p268, %s269, %s270
      %p274 = pneg %p268
      %p275 = scmp.eq.s32.totalorder %s28, 1
      %p276 = por %p274, %p275
      %p277 = scmp.ne.s32.totalorder %s269, %s272
      %p278 = scmp.eq.s32.totalorder %s28, 0
      %p279 = por %p277, %p278
      %p280 = scmp.ne.s32.totalorder %s269, %s272
      %p281 = scmp.eq.s32.totalorder %s33, 1
      %p282 = por %p280, %p281
      %p283 = scmp.ne.s32.totalorder %s272, %s273
      %p284 = scmp.eq.s32.totalorder %s33, 0
      %p285 = por %p283, %p284
      %p286 = scmp.ne.s32.totalorder %s272, %s273
      %p287 = scmp.eq.s32.totalorder %s34, 1
      %p288 = por %p286, %p287
      %p290 = scmp.ne.s32.totalorder %s273, %s289
      %p291 = scmp.eq.s32.totalorder %s34, 0
      %p292 = por %p290, %p291
      %s293 = ssub.s32 %s36, %s43
      %p294 = scmp.eq.s32.totalorder %s293, 0
      %s296 = sadd.s32 %s295, 1
      %s297 = scalar_select %p294, %s295, %s296
      %p300 = pneg %p294
      %p301 = scmp.eq.s32.totalorder %s28, 1
      %p302 = por %p300, %p301
      %p303 = scmp.ne.s32.totalorder %s295, %s298
      %p304 = scmp.eq.s32.totalorder %s28, 0
      %p305 = por %p303, %p304
      %p306 = scmp.ne.s32.totalorder %s295, %s298
      %p307 = scmp.eq.s32.totalorder %s33, 1
      %p308 = por %p306, %p307
      %p309 = scmp.ne.s32.totalorder %s298, %s299
      %p310 = scmp.eq.s32.totalorder %s33, 0
      %p311 = por %p309, %p310
      %p312 = scmp.ne.s32.totalorder %s298, %s299
      %p313 = scmp.eq.s32.totalorder %s34, 1
      %p314 = por %p312, %p313
      %p316 = scmp.ne.s32.totalorder %s299, %s315
      %p317 = scmp.eq.s32.totalorder %s34, 0
      %p318 = por %p316, %p317
      %s319 = ssub.s32 %s35, %s47
      %p320 = scmp.eq.s32.totalorder %s319, 0
      %s322 = sadd.s32 %s321, 1
      %s323 = scalar_select %p320, %s321, %s322
      %p326 = pneg %p320
      %p327 = scmp.eq.s32.totalorder %s28, 1
      %p328 = por %p326, %p327
      %p329 = scmp.ne.s32.totalorder %s321, %s324
      %p330 = scmp.eq.s32.totalorder %s28, 0
      %p331 = por %p329, %p330
      %p332 = scmp.ne.s32.totalorder %s321, %s324
      %p333 = scmp.eq.s32.totalorder %s33, 1
      %p334 = por %p332, %p333
      %p335 = scmp.ne.s32.totalorder %s324, %s325
      %p336 = scmp.eq.s32.totalorder %s33, 0
      %p337 = por %p335, %p336
      %p338 = scmp.ne.s32.totalorder %s324, %s325
      %p339 = scmp.eq.s32.totalorder %s34, 1
      %p340 = por %p338, %p339
      %p342 = scmp.ne.s32.totalorder %s325, %s341
      %p343 = scmp.eq.s32.totalorder %s34, 0
      %p344 = por %p342, %p343
      %p345 = scmp.le.s32.totalorder 1, %s28
      %p346 = scmp.lt.s32.totalorder %s28, 3
      %p347 = pnand %p345, %p346
      %p348 = pneg %p347
      // Predicated region
      $region9: #{tpu_custom_call.1} parent=5 // pred_check
        _
      $region10: #{tpu_custom_call.1} parent=5 // pred_check_branch
        %350 = sbr.rel (%p347) target = $region12
      $region11: #{tpu_custom_call.1} parent=5 // pred_region
        %s351 = ssub.s32 %s28, 1
        // Predicated region
        $region13: #{tpu_custom_call.1} parent=11 // pred_check
          %p352 = pneg %p66
        $region14: #{tpu_custom_call.1} parent=11 // pred_check_branch
          %354 = sbr.rel (%p352) target = $region16
        $region15: #{tpu_custom_call.1} parent=11 // pred_region
          %s355 = smul.u32 2, %s37
          %s357 = ssub.s32 256, 256
          %358 = vsyncadd [#allocation5], %s357
          %s359 = smul.addr %s355, 128
          %s360 = scalar_lea.hbm %s1, %s359
          %s361 = sshll.u32 [#allocation4], 4
          %s362 = int_to_ptr.vmem [resolvable:$true] %s361
          %367 = dma.hbm_to_vmem [thread:$0]  %s360, 256, %s362, [#allocation5], 128, 128, 8
        $region16: #{tpu_custom_call.1} parent=11 // pred_fallthru
          _
        // Predicated region
        $region17: #{tpu_custom_call.1} parent=11 // pred_check
          %p368 = pneg %p87
        $region18: #{tpu_custom_call.1} parent=11 // pred_check_branch
          %370 = sbr.rel (%p368) target = $region20
        $region19: #{tpu_custom_call.1} parent=11 // pred_region
          %s372 = ssub.s32 128, 128
          %373 = vsyncadd [#allocation8], %s372
          %s374 = sshll.u32 [#allocation7], 4
          %s375 = int_to_ptr.vmem [resolvable:$true] %s374
          %380 = dma.hbm_to_vmem [thread:$0]  %s2, 128, %s375, [#allocation8], 64, 64, 4
        $region20: #{tpu_custom_call.1} parent=11 // pred_fallthru
          _
        // Predicated region
        $region21: #{tpu_custom_call.1} parent=11 // pred_check
          %p381 = pneg %p108
        $region22: #{tpu_custom_call.1} parent=11 // pred_check_branch
          %383 = sbr.rel (%p381) target = $region24
        $region23: #{tpu_custom_call.1} parent=11 // pred_region
          _
        $region24: #{tpu_custom_call.1} parent=11 // pred_fallthru
          _
        // Predicated region
        $region25: #{tpu_custom_call.1} parent=11 // pred_check
          %p384 = pneg %p129
        $region26: #{tpu_custom_call.1} parent=11 // pred_check_branch
          %386 = sbr.rel (%p384) target = $region28
        $region27: #{tpu_custom_call.1} parent=11 // pred_region
          %s388 = ssub.s32 256, 256
          %389 = vsyncadd [#allocation8], %s388
          %s390 = sshll.u32 [#allocation9], 4
          %s391 = int_to_ptr.vmem [resolvable:$true] %s390
          %396 = dma.hbm_to_vmem [thread:$0]  %s4, 256, %s391, [#allocation8], 128, 128, 8
        $region28: #{tpu_custom_call.1} parent=11 // pred_fallthru
          _
      $region12: #{tpu_custom_call.1} parent=5 // pred_fallthru
        _
      %p397 = scmp.lt.s32.totalorder %s28, 2
      // Predicated region
      $region29: #{tpu_custom_call.1} parent=5 // pred_check
        %p398 = pneg %p397
      $region30: #{tpu_custom_call.1} parent=5 // pred_check_branch
        %400 = sbr.rel (%p398) target = $region32
      $region31: #{tpu_custom_call.1} parent=5 // pred_region
        // Predicated region
        $region33: #{tpu_custom_call.1} parent=31 // pred_check
          %p401 = pneg %p149
        $region34: #{tpu_custom_call.1} parent=31 // pred_check_branch
          %403 = sbr.rel (%p401) target = $region36
        $region35: #{tpu_custom_call.1} parent=31 // pred_region
          %p404 = scmp.lt.s32.totalorder %s36, 1
          %s405 = scalar_select %p404, %s36, 1
          %s406 = smul.addr %s405, 4
          %s407 = smul.addr %s406, 4
          %s408 = scalar_lea.vmem %s5, %s407
        $region36: #{tpu_custom_call.1} parent=31 // pred_fallthru
          _
        // Predicated region
        $region37: #{tpu_custom_call.1} parent=31 // pred_check
          %p409 = pneg %p175
        $region38: #{tpu_custom_call.1} parent=31 // pred_check_branch
          %411 = sbr.rel (%p409) target = $region40
        $region39: #{tpu_custom_call.1} parent=31 // pred_region
          %s412 = sand.u32 %s28, 1
          %s413 = scalar_lea.sflag [#allocation11], %s412
          %s414 = sand.u32 %s165, 1
          %s415 = scalar_lea.vmem [#allocation10], %s414
          %s417 = ssub.s32 16, 16
          %418 = vsyncadd %s413, %s417
          %s419 = smul.addr %s36, 16
          %s420 = scalar_lea.hbm %s6, %s419
          %s422 = sshll.u32 %s415, 4
          %s423 = int_to_ptr.vmem [resolvable:$true] %s422
          %425 = dma.hbm_to_vmem [thread:$0]  %s420, 16, %s423, %s413
        $region40: #{tpu_custom_call.1} parent=31 // pred_fallthru
          _
        // Predicated region
        $region41: #{tpu_custom_call.1} parent=31 // pred_check
          %p426 = pneg %p201
        $region42: #{tpu_custom_call.1} parent=31 // pred_check_branch
          %428 = sbr.rel (%p426) target = $region44
        $region43: #{tpu_custom_call.1} parent=31 // pred_region
          %p429 = scmp.lt.s32.totalorder %s36, 1
          %s430 = scalar_select %p429, %s36, 1
          %s431 = smul.addr %s430, 4
          %s432 = smul.addr %s431, 4
          %s433 = scalar_lea.vmem %s7, %s432
        $region44: #{tpu_custom_call.1} parent=31 // pred_fallthru
          _
        // Predicated region
        $region45: #{tpu_custom_call.1} parent=31 // pred_check
          %p434 = pneg %p227
        $region46: #{tpu_custom_call.1} parent=31 // pred_check_branch
          %436 = sbr.rel (%p434) target = $region48
        $region47: #{tpu_custom_call.1} parent=31 // pred_region
          %p437 = scmp.lt.s32.totalorder %s36, 1
          %s438 = scalar_select %p437, %s36, 1
          %s439 = smul.addr %s438, 4
          %s440 = smul.addr %s439, 4
          %s441 = scalar_lea.vmem %s8, %s440
        $region48: #{tpu_custom_call.1} parent=31 // pred_fallthru
          _
        // Predicated region
        $region49: #{tpu_custom_call.1} parent=31 // pred_check
          %p442 = pneg %p253
        $region50: #{tpu_custom_call.1} parent=31 // pred_check_branch
          %444 = sbr.rel (%p442) target = $region52
        $region51: #{tpu_custom_call.1} parent=31 // pred_region
          %s445 = sand.u32 %s28, 1
          %s446 = scalar_lea.sflag [#allocation11], %s445
          %s447 = sand.u32 %s243, 1
          %s448 = scalar_lea.vmem [#allocation12], %s447
          %s450 = ssub.s32 16, 16
          %451 = vsyncadd %s446, %s450
          %s452 = smul.addr %s36, 16
          %s453 = scalar_lea.hbm %s9, %s452
          %s455 = sshll.u32 %s448, 4
          %s456 = int_to_ptr.vmem [resolvable:$true] %s455
          %458 = dma.hbm_to_vmem [thread:$0]  %s453, 16, %s456, %s446
        $region52: #{tpu_custom_call.1} parent=31 // pred_fallthru
          _
        // Predicated region
        $region53: #{tpu_custom_call.1} parent=31 // pred_check
          %p459 = pneg %p279
        $region54: #{tpu_custom_call.1} parent=31 // pred_check_branch
          %461 = sbr.rel (%p459) target = $region56
        $region55: #{tpu_custom_call.1} parent=31 // pred_region
          %p462 = scmp.lt.s32.totalorder %s36, 1
          %s463 = scalar_select %p462, %s36, 1
          %s464 = smul.addr %s463, 8
          %s465 = smul.addr %s464, 4
          %s466 = scalar_lea.vmem %s10, %s465
        $region56: #{tpu_custom_call.1} parent=31 // pred_fallthru
          _
        // Predicated region
        $region57: #{tpu_custom_call.1} parent=31 // pred_check
          %p467 = pneg %p305
        $region58: #{tpu_custom_call.1} parent=31 // pred_check_branch
          %469 = sbr.rel (%p467) target = $region60
        $region59: #{tpu_custom_call.1} parent=31 // pred_region
          %p470 = scmp.lt.s32.totalorder %s36, 1
          %s471 = scalar_select %p470, %s36, 1
          %s472 = smul.addr %s471, 8
          %s473 = scalar_lea.vmem %s11, %s472
        $region60: #{tpu_custom_call.1} parent=31 // pred_fallthru
          _
      $region32: #{tpu_custom_call.1} parent=5 // pred_fallthru
        _
      %p474 = scmp.le.s32.totalorder 1, %s28
      %p475 = scmp.lt.s32.totalorder %s28, 3
      %p476 = pnand %p474, %p475
      %p477 = pneg %p476
      // Predicated region
      $region61: #{tpu_custom_call.1} parent=5 // pred_check
        _
      $region62: #{tpu_custom_call.1} parent=5 // pred_check_branch
        %479 = sbr.rel (%p476) target = $region64
      $region63: #{tpu_custom_call.1} parent=5 // pred_region
        %s480 = ssub.s32 %s28, 1
        // Predicated region
        $region65: #{tpu_custom_call.1} parent=63 // pred_check
          %p481 = pneg %p66
        $region66: #{tpu_custom_call.1} parent=63 // pred_check_branch
          %483 = sbr.rel (%p481) target = $region68
        $region67: #{tpu_custom_call.1} parent=63 // pred_region
          %484 = dma.done [#allocation5], 256
        $region68: #{tpu_custom_call.1} parent=63 // pred_fallthru
          _
        // Predicated region
        $region69: #{tpu_custom_call.1} parent=63 // pred_check
          %p485 = pneg %p87
        $region70: #{tpu_custom_call.1} parent=63 // pred_check_branch
          %487 = sbr.rel (%p485) target = $region72
        $region71: #{tpu_custom_call.1} parent=63 // pred_region
          %488 = dma.done [#allocation8], 128
        $region72: #{tpu_custom_call.1} parent=63 // pred_fallthru
          _
        // Predicated region
        $region73: #{tpu_custom_call.1} parent=63 // pred_check
          %p489 = pneg %p129
        $region74: #{tpu_custom_call.1} parent=63 // pred_check_branch
          %491 = sbr.rel (%p489) target = $region76
        $region75: #{tpu_custom_call.1} parent=63 // pred_region
          %492 = dma.done [#allocation8], 256
        $region76: #{tpu_custom_call.1} parent=63 // pred_fallthru
          _
        %s493 = sand.u32 %s33, 1
        %s494 = scalar_lea.sflag [#allocation11], %s493
        %s495 = sand.u32 %s168, 1
        %s496 = scalar_lea.vmem [#allocation10], %s495
        // Predicated region
        $region77: #{tpu_custom_call.1} parent=63 // pred_check
          %p497 = pneg %p181
        $region78: #{tpu_custom_call.1} parent=63 // pred_check_branch
          %499 = sbr.rel (%p497) target = $region80
        $region79: #{tpu_custom_call.1} parent=63 // pred_region
          %500 = dma.done %s494, 16
        $region80: #{tpu_custom_call.1} parent=63 // pred_fallthru
          _
        %s501 = sand.u32 %s33, 1
        %s502 = scalar_lea.sflag [#allocation11], %s501
        %s503 = sand.u32 %s246, 1
        %s504 = scalar_lea.vmem [#allocation12], %s503
        // Predicated region
        $region81: #{tpu_custom_call.1} parent=63 // pred_check
          %p505 = pneg %p259
        $region82: #{tpu_custom_call.1} parent=63 // pred_check_branch
          %507 = sbr.rel (%p505) target = $region84
        $region83: #{tpu_custom_call.1} parent=63 // pred_region
          %508 = dma.done %s502, 16
        $region84: #{tpu_custom_call.1} parent=63 // pred_fallthru
          _
        %p509 = pneg %p66
        %p510 = pneg %p63
        %p511 = pneg %p87
        %p512 = pneg %p84
        %p513 = pneg %p108
        %p514 = pneg %p105
        %p515 = pneg %p129
        %p516 = pneg %p126
        %p517 = scmp.lt.s32.totalorder %s38, 1
        %s518 = scalar_select %p517, %s38, 1
        %s519 = smul.addr %s518, 4
        %s520 = smul.addr %s519, 4
        %s521 = scalar_lea.vmem %s5, %s520
        %p522 = pneg %p155
        %p523 = pneg %p152
        %s524 = sand.u32 %s33, 1
        %s525 = scalar_lea.sflag [#allocation11], %s524
        %s526 = sand.u32 %s168, 1
        %s527 = scalar_lea.vmem [#allocation10], %s526
        %p528 = pneg %p181
        %p529 = pneg %p178
        %p530 = scmp.lt.s32.totalorder %s38, 1
        %s531 = scalar_select %p530, %s38, 1
        %s532 = smul.addr %s531, 4
        %s533 = smul.addr %s532, 4
        %s534 = scalar_lea.vmem %s7, %s533
        %p535 = pneg %p207
        %p536 = pneg %p204
        %p537 = scmp.lt.s32.totalorder %s38, 1
        %s538 = scalar_select %p537, %s38, 1
        %s539 = smul.addr %s538, 4
        %s540 = smul.addr %s539, 4
        %s541 = scalar_lea.vmem %s8, %s540
        %p542 = pneg %p233
        %p543 = pneg %p230
        %s544 = sand.u32 %s33, 1
        %s545 = scalar_lea.sflag [#allocation11], %s544
        %s546 = sand.u32 %s246, 1
        %s547 = scalar_lea.vmem [#allocation12], %s546
        %p548 = pneg %p259
        %p549 = pneg %p256
        %p550 = scmp.lt.s32.totalorder %s38, 1
        %s551 = scalar_select %p550, %s38, 1
        %s552 = smul.addr %s551, 8
        %s553 = smul.addr %s552, 4
        %s554 = scalar_lea.vmem %s10, %s553
        %p555 = pneg %p285
        %p556 = pneg %p282
        %p557 = scmp.lt.s32.totalorder %s38, 1
        %s558 = scalar_select %p557, %s38, 1
        %s559 = smul.addr %s558, 8
        %s560 = scalar_lea.vmem %s11, %s559
        %p561 = pneg %p311
        %p562 = pneg %p308
        %p563 = pneg %p337
        %p564 = pneg %p334
        %s565 = smul.u32 2, %s37
        %p566 = scmp.lt.s32.totalorder %s38, 1
        %s567 = scalar_select %p566, %s38, 1
        %s568 = smul.addr %s567, 4
        %s569 = smul.addr %s568, 4
        %s570 = scalar_lea.vmem %s5, %s569
        %p571 = scmp.lt.s32.totalorder %s38, 1
        %s572 = scalar_select %p571, %s38, 1
        %s573 = smul.addr %s572, 4
        %s574 = smul.addr %s573, 4
        %s575 = scalar_lea.vmem %s7, %s574
        %p576 = scmp.lt.s32.totalorder %s38, 1
        %s577 = scalar_select %p576, %s38, 1
        %s578 = smul.addr %s577, 4
        %s579 = smul.addr %s578, 4
        %s580 = scalar_lea.vmem %s8, %s579
        %p581 = scmp.lt.s32.totalorder %s38, 1
        %s582 = scalar_select %p581, %s38, 1
        %s583 = smul.addr %s582, 8
        %s584 = smul.addr %s583, 4
        %s585 = scalar_lea.vmem %s10, %s584
        %p586 = scmp.lt.s32.totalorder %s38, 1
        %s587 = scalar_select %p586, %s38, 1
        %s588 = smul.addr %s587, 8
        %s589 = scalar_lea.vmem %s11, %s588
        %s590 = smul.u32 2, %s37
        %v592 = vlaneseq
        %v593 = vshrl.u32 %v592, 7
        %v594 = vadd.s32 %v593, 8
        %v595 = vlaneseq
        %v596 = vand.u32 %v595, 127
        %s597 = smul.u32 %s37, 2
        %s598 = sld [smem:[#allocation3 + %s597]]
        %vm599 = vcmp.ge.s32.totalorder %v593, 0
        %vm600 = vcmp.ge.s32.totalorder %v594, 0
        %vm601 = vcmp.lt.s32.totalorder %v593, 8
        %vm602 = vcmp.lt.s32.totalorder %v594, 8
        %vm603 = vmand %vm599, %vm601
        %vm604 = vmand %vm600, %vm602
        %v605 = vstv %s598
        %vm606 = vcmp.lt.s32.totalorder %v593, %v605
        %vm607 = vcmp.lt.s32.totalorder %v594, %v605
        %vm608 = vmand %vm599, %vm606
        %vm609 = vmand %vm600, %vm607
        %vm610 = vcmp.ge.s32.totalorder %v596, 0
        %vm611 = vcmp.lt.s32.totalorder %v596, %v605
        %vm612 = vmand %vm610, %vm611
        %v613 = vsel %vm608, 1.0, 0.0
        %v614 = vsel %vm609, 1.0, 0.0
        %v615 = vsel %vm603, 1, 0
        %v616 = vsel %vm604, 1, 0
        %vm617 = vcmp.eq.s32.totalorder %v615, 1
        %vm618 = vcmp.eq.s32.totalorder %v616, 1
        %v619 = vsel %vm612, 1, 0
        %vm620 = vcmp.eq.s32.totalorder %v619, 1
        %vm621 = vmand %vm617, %vm620
        %vm622 = vmand %vm618, %vm620
        %v623 = vsel %vm621, 0.0, -1e+30
        %v624 = vsel %vm622, 0.0, -1e+30
        %s625 = sadd.s32 %s597, 1
        %s626 = sld [smem:[#allocation3 + %s625]]
        %vm627 = vcmp.ge.s32.totalorder %v593, 8
        %vm628 = vcmp.ge.s32.totalorder %v594, 8
        %vm629 = vcmp.lt.s32.totalorder %v593, 16
        %vm630 = vcmp.lt.s32.totalorder %v594, 16
        %vm631 = vmand %vm627, %vm629
        %vm632 = vmand %vm628, %vm630
        %s633 = sadd.s32 %s626, 8
        %v634 = vstv %s633
        %vm635 = vcmp.lt.s32.totalorder %v593, %v634
        %vm636 = vcmp.lt.s32.totalorder %v594, %v634
        %vm637 = vmand %vm627, %vm635
        %vm638 = vmand %vm628, %vm636
        %vm639 = vcmp.ge.s32.totalorder %v596, 8
        %vm640 = vcmp.lt.s32.totalorder %v596, %v634
        %vm641 = vmand %vm639, %vm640
        %v642 = vsel %vm637, 1.0, %v613
        %v643 = vsel %vm638, 1.0, %v614
        %v644 = vsel %vm631, 1, 0
        %v645 = vsel %vm632, 1, 0
        %vm646 = vcmp.eq.s32.totalorder %v644, 1
        %vm647 = vcmp.eq.s32.totalorder %v645, 1
        %v648 = vsel %vm641, 1, 0
        %vm649 = vcmp.eq.s32.totalorder %v648, 1
        %vm650 = vmand %vm646, %vm649
        %vm651 = vmand %vm647, %vm649
        %v652 = vsel %vm650, 0.0, %v623
        %v653 = vsel %vm651, 0.0, %v624
        %p654 = scmp.eq.s32.totalorder %s38, 0
        // Predicated region
        $region85: #{tpu_custom_call.1} parent=63 // pred_check
          %p655 = pneg %p654
        $region86: #{tpu_custom_call.1} parent=63 // pred_check_branch
          %657 = sbr.rel (%p655) target = $region88
        $region87: #{tpu_custom_call.1} parent=63 // pred_region
          %v658 = vld [vmem:[#allocation4] sm:$0xff]
          %v659 = vld [vmem:[#allocation4 + $0x8] sm:$0xff]
          %v660 = vpack.c.bf16 %v659, %v658
          %v661 = vld [vmem:[#allocation7] sm:$0xf]
          %v662 = vld [vmem:[#allocation7 + $0x4] sm:$0xf]
          %v663 = vld [vmem:[%s3] sm:$0x1]
          %v664 = vlaneseq
          %v665 = vshrl.u32 %v664, 7
          %v666 = vsub.s32 0, %v665
          %v667 = vrot.slane %v663, %v666
          %v670 = vunpack.c.l.b16 %v661
          %v671 = vunpack.c.l.b16 %v662
          %v672 = vpack.c.b16 %v671, %v670
          %vm674 = vcmask 130048
          %v676 = vsel %vm674, %v660, 0
          %678 = vmatprep.subr.bf16.mxu0 0
          %679 = vmatpush1.bf16.msra.mxu0 0
          %680 = vmatprep.subr.bf16.mxu0 0
          %681 = vmatpush1.bf16.msra.mxu0 0
          %682 = vmatprep.subr.bf16.mxu0 0
          %683 = vmatpush1.bf16.msra.mxu0 0
          %684 = vmatprep.subr.bf16.mxu0 0
          %685 = vmatpush1.bf16.msra.mxu0 0
          %686 = vmatprep.subr.bf16.mxu0 0
          %687 = vmatpush1.bf16.msra.mxu0 0
          %688 = vmatprep.subr.bf16.mxu0 0
          %689 = vmatpush1.bf16.msra.mxu0 0
          %690 = vmatprep.subr.bf16.mxu0 0
          %691 = vmatpush1.bf16.msra.mxu0 0
          %692 = vmatprep.subr.bf16.mxu0 0
          %693 = vmatpush1.bf16.msra.mxu0 %v672
          %694 = vmatprep.subr.bf16.mxu0 0
          %695 = vmatpush2.bf16.msra.mxu0 0
          %696 = vmatprep.subr.bf16.mxu0 0
          %697 = vmatpush2.bf16.msra.mxu0 0
          %698 = vmatprep.subr.bf16.mxu0 0
          %699 = vmatpush2.bf16.msra.mxu0 0
          %700 = vmatprep.subr.bf16.mxu0 0
          %701 = vmatpush2.bf16.msra.mxu0 0
          %702 = vmatprep.subr.bf16.mxu0 0
          %703 = vmatpush2.bf16.msra.mxu0 0
          %704 = vmatprep.subr.bf16.mxu0 0
          %705 = vmatpush2.bf16.msra.mxu0 0
          %706 = vmatprep.subr.bf16.mxu0 0
          %707 = vmatpush2.bf16.msra.mxu0 0
          %708 = vmatprep.subr.bf16.mxu0 0
          %709 = vmatpush2.bf16.msra.mxu0 0
          %710 = vmatprep.mubr.bf16.mxu0 0
          %711 = vmatmul.mubr.bf16.gmra.mxu0 %v676
          %v712 = vpop.f32.mrf.mxu0
          %v713 = vadd.f32 %v667, %v712
          %v714 = vpop.f32.mrf.mxu0
          %v715 = vpop.f32.mrf.mxu0
          %v716 = vadd.f32 %v667, %v715
          %v717 = vpop.f32.mrf.mxu0
          %718 = vdwg.mxu0
          %v719 = vld [vmem:[%s3 + $0x1] sm:$0x1]
          %v720 = vld [vmem:[%s3 + $0x2] sm:$0x1]
          %vm721 = vcmask 261120
          %v722 = vsel %vm721, %v713, 0.0
          %723 = vadd.xlane.f32.xlu0 %v722
          %v724 = vpop.xlane.xlu0 %723
          %v725 = vsel %vm721, %v716, 0.0
          %726 = vadd.xlane.f32.xlu0 %v725
          %v727 = vpop.xlane.xlu0 %726
          %v728 = vrcp.pop 32.0
          %v729 = vmul.f32 %v724, %v728
          %v730 = vmul.f32 %v727, %v728
          %v731 = vsub.f32 %v713, %v729
          %v732 = vsub.f32 %v716, %v730
          %v733 = vmul.f32 %v731, %v731
          %v734 = vmul.f32 %v732, %v732
          %v735 = vsel %vm721, %v733, 0.0
          %736 = vadd.xlane.f32.xlu0 %v735
          %v737 = vpop.xlane.xlu0 %736
          %v738 = vsel %vm721, %v734, 0.0
          %739 = vadd.xlane.f32.xlu0 %v738
          %v740 = vpop.xlane.xlu0 %739
          %v741 = vmul.f32 %v737, %v728
          %v742 = vmul.f32 %v740, %v728
          %v743 = vadd.f32 %v741, 1e-05
          %v744 = vadd.f32 %v742, 1e-05
          %v745 = vrsqrt.pop %v743
          %v746 = vrsqrt.pop %v744
          %v747 = vmul.f32 %v731, %v745
          %v748 = vmul.f32 %v732, %v746
          %v749 = vlaneseq
          %v750 = vshrl.u32 %v749, 7
          %v751 = vsub.s32 0, %v750
          %v752 = vrot.slane %v719, %v751
          %v753 = vmul.f32 %v747, %v752
          %v754 = vmul.f32 %v748, %v752
          %v755 = vlaneseq
          %v756 = vshrl.u32 %v755, 7
          %v757 = vsub.s32 0, %v756
          %v758 = vrot.slane %v720, %v757
          %v759 = vadd.f32 %v753, %v758
          %v760 = vadd.f32 %v754, %v758
          %v761 = vld [vmem:[#allocation9] sm:$0xff]
          %v762 = vld [vmem:[#allocation9 + $0x8] sm:$0xff]
          %v763 = vadd.f32 %v759, %v761
          %v764 = vadd.f32 %v760, %v762
          %765 = vst.msk [vmem:[#allocation13] sm:$0xff] %vm721, %v763
          %766 = vst.msk [vmem:[#allocation13 + $0x8] sm:$0xff] %vm721, %v764
        $region88: #{tpu_custom_call.1} parent=63 // pred_fallthru
          _
        %v767 = vld [vmem:[#allocation13] sm:$0xff]
        %v768 = vld [vmem:[#allocation13 + $0x8] sm:$0xff]
        %v769 = vpack.c.bf16 %v768, %v767
        %v770 = vld [vmem:[%s570] sm:$0xf]
        %v771 = vld [vmem:[%s570 + $0x4] sm:$0xf]
        %v772 = vld [vmem:[%s570 + $0x8] sm:$0xf]
        %v773 = vld [vmem:[%s570 + $0xc] sm:$0xf]
        %v774 = vld [vmem:[%s496] sm:$0x1]
        %v776 = vlaneseq
        %v777 = vshrl.u32 %v776, 7
        %v778 = vsub.s32 0, %v777
        %v779 = vrot.slane %v774, %v778
        %v785 = vunpack.c.l.b16 %v770
        %v786 = vunpack.c.l.b16 %v771
        %v787 = vunpack.c.l.b16 %v772
        %v788 = vunpack.c.l.b16 %v773
        %v789 = vpack.c.b16 %v786, %v785
        %v790 = vpack.c.b16 %v788, %v787
        %vm793 = vcmask 261120
        %v795 = vsel %vm793, %v769, 0
        %797 = vmatprep.subr.bf16.mxu0 0
        %798 = vmatpush1.bf16.msra.mxu0 0
        %799 = vmatprep.subr.bf16.mxu0 0
        %800 = vmatpush1.bf16.msra.mxu0 0
        %801 = vmatprep.subr.bf16.mxu0 0
        %802 = vmatpush1.bf16.msra.mxu0 0
        %803 = vmatprep.subr.bf16.mxu0 0
        %804 = vmatpush1.bf16.msra.mxu0 0
        %805 = vmatprep.subr.bf16.mxu0 0
        %806 = vmatpush1.bf16.msra.mxu0 0
        %807 = vmatprep.subr.bf16.mxu0 0
        %808 = vmatpush1.bf16.msra.mxu0 0
        %809 = vmatprep.subr.bf16.mxu0 0
        %810 = vmatpush1.bf16.msra.mxu0 %v790
        %811 = vmatprep.subr.bf16.mxu0 0
        %812 = vmatpush1.bf16.msra.mxu0 %v789
        %813 = vmatprep.subr.bf16.mxu0 0
        %814 = vmatpush2.bf16.msra.mxu0 0
        %815 = vmatprep.subr.bf16.mxu0 0
        %816 = vmatpush2.bf16.msra.mxu0 0
        %817 = vmatprep.subr.bf16.mxu0 0
        %818 = vmatpush2.bf16.msra.mxu0 0
        %819 = vmatprep.subr.bf16.mxu0 0
        %820 = vmatpush2.bf16.msra.mxu0 0
        %821 = vmatprep.subr.bf16.mxu0 0
        %822 = vmatpush2.bf16.msra.mxu0 0
        %823 = vmatprep.subr.bf16.mxu0 0
        %824 = vmatpush2.bf16.msra.mxu0 0
        %825 = vmatprep.subr.bf16.mxu0 0
        %826 = vmatpush2.bf16.msra.mxu0 0
        %827 = vmatprep.subr.bf16.mxu0 0
        %828 = vmatpush2.bf16.msra.mxu0 0
        %829 = vmatprep.mubr.bf16.mxu0 0
        %830 = vmatmul.mubr.bf16.gmra.mxu0 %v795
        %v831 = vpop.f32.mrf.mxu0
        %v832 = vadd.f32 %v779, %v831
        %v833 = vpop.f32.mrf.mxu0
        %v834 = vpop.f32.mrf.mxu0
        %v835 = vadd.f32 %v779, %v834
        %v836 = vpop.f32.mrf.mxu0
        %837 = vdwg.mxu0
        %v838 = vmul.f32 %v832, 0.35355338
        %v839 = vmul.f32 %v835, 0.35355338
        %v840 = vld [vmem:[%s575] sm:$0xf]
        %v841 = vld [vmem:[%s575 + $0x4] sm:$0xf]
        %v842 = vld [vmem:[%s575 + $0x8] sm:$0xf]
        %v843 = vld [vmem:[%s575 + $0xc] sm:$0xf]
        %v844 = vpack.c.bf16 %v839, %v838
        %v845 = vpack.c.bf16 %v835, %v832
        %847 = vrot.lane.b32.xlu0 %v845, 96
        %v848 = vpop.permute.xlu0 %847
        %vm849 = vcmask 64512
        %v851 = vsel %vm849, %v844, 0
        %v854 = vsel %vm849, %v848, 0
        %856 = vmatprep.subr.bf16.mxu0 0
        %857 = vmatpush1.bf16.xpose.msra.mxu0 0
        %858 = vmatprep.subr.bf16.mxu0 0
        %859 = vmatpush1.bf16.xpose.msra.mxu0 0
        %860 = vmatprep.subr.bf16.mxu0 0
        %861 = vmatpush1.bf16.xpose.msra.mxu0 0
        %862 = vmatprep.subr.bf16.mxu0 0
        %863 = vmatpush1.bf16.xpose.msra.mxu0 0
        %864 = vmatprep.subr.bf16.mxu0 0
        %865 = vmatpush1.bf16.xpose.msra.mxu0 0
        %866 = vmatprep.subr.bf16.mxu0 0
        %867 = vmatpush1.bf16.xpose.msra.mxu0 0
        %868 = vmatprep.subr.bf16.mxu0 0
        %869 = vmatpush1.bf16.xpose.msra.mxu0 0
        %870 = vmatprep.subr.bf16.mxu0 0
        %871 = vmatpush1.bf16.xpose.msra.mxu0 %v854
        %872 = vmatprep.subr.bf16.mxu0 0
        %873 = vmatpush2.bf16.xpose.msra.mxu0 0
        %874 = vmatprep.subr.bf16.mxu0 0
        %875 = vmatpush2.bf16.xpose.msra.mxu0 0
        %876 = vmatprep.subr.bf16.mxu0 0
        %877 = vmatpush2.bf16.xpose.msra.mxu0 0
        %878 = vmatprep.subr.bf16.mxu0 0
        %879 = vmatpush2.bf16.xpose.msra.mxu0 0
        %880 = vmatprep.subr.bf16.mxu0 0
        %881 = vmatpush2.bf16.xpose.msra.mxu0 0
        %882 = vmatprep.subr.bf16.mxu0 0
        %883 = vmatpush2.bf16.xpose.msra.mxu0 0
        %884 = vmatprep.subr.bf16.mxu0 0
        %885 = vmatpush2.bf16.xpose.msra.mxu0 0
        %886 = vmatprep.subr.bf16.mxu0 0
        %887 = vmatpush2.bf16.xpose.msra.mxu0 0
        %888 = vmatprep.mubr.bf16.mxu0 0
        %889 = vmatmul.mubr.bf16.gmra.mxu0 %v851
        %v890 = vpop.f32.mrf.mxu0
        %v891 = vadd.f32 %v652, %v890
        %v892 = vpop.f32.mrf.mxu0
        %v893 = vpop.f32.mrf.mxu0
        %v894 = vadd.f32 %v653, %v893
        %v895 = vpop.f32.mrf.mxu0
        %896 = vdwg.mxu0
        %vm897 = vcmask 130048
        %v898 = vsel %vm897, %v891, -inf
        %899 = vmax.xlane.f32.xlu0 %v898
        %v900 = vpop.xlane.xlu0 %899
        %v901 = vsel %vm897, %v894, -inf
        %902 = vmax.xlane.f32.xlu0 %v901
        %v903 = vpop.xlane.xlu0 %902
        %v904 = vsub.f32 %v891, %v900
        %v905 = vsub.f32 %v894, %v903
        %v906 = vmul.f32 %v904, 1.442695
        %v907 = vpow.pop %v906
        %v908 = vmul.f32 %v905, 1.442695
        %v909 = vpow.pop %v908
        %v910 = vsel %vm897, %v907, 0.0
        %911 = vadd.xlane.f32.xlu0 %v910
        %v912 = vpop.xlane.xlu0 %911
        %v913 = vsel %vm897, %v909, 0.0
        %914 = vadd.xlane.f32.xlu0 %v913
        %v915 = vpop.xlane.xlu0 %914
        %v916 = vrcp.pop %v912
        %v917 = vrcp.pop %v915
        %v918 = vmul.f32 %v907, %v916
        %v919 = vmul.f32 %v909, %v917
        %v920 = vpack.c.bf16 %v919, %v918
        %921 = vrot.lane.b32.xlu0 %v845, 64
        %v922 = vpop.permute.xlu0 %921
        %v925 = vsel %vm897, %v920, 0
        %927 = vmatprep.subr.bf16.mxu0 0
        %928 = vmatpush1.bf16.msra.mxu0 0
        %929 = vmatprep.subr.bf16.mxu0 0
        %930 = vmatpush1.bf16.msra.mxu0 0
        %931 = vmatprep.subr.bf16.mxu0 0
        %932 = vmatpush1.bf16.msra.mxu0 0
        %933 = vmatprep.subr.bf16.mxu0 0
        %934 = vmatpush1.bf16.msra.mxu0 0
        %935 = vmatprep.subr.bf16.mxu0 0
        %936 = vmatpush1.bf16.msra.mxu0 0
        %937 = vmatprep.subr.bf16.mxu0 0
        %938 = vmatpush1.bf16.msra.mxu0 0
        %939 = vmatprep.subr.bf16.mxu0 0
        %940 = vmatpush1.bf16.msra.mxu0 0
        %941 = vmatprep.subr.bf16.mxu0 0
        %942 = vmatpush1.bf16.msra.mxu0 %v922
        %943 = vmatprep.subr.bf16.mxu0 0
        %944 = vmatpush2.bf16.msra.mxu0 0
        %945 = vmatprep.subr.bf16.mxu0 0
        %946 = vmatpush2.bf16.msra.mxu0 0
        %947 = vmatprep.subr.bf16.mxu0 0
        %948 = vmatpush2.bf16.msra.mxu0 0
        %949 = vmatprep.subr.bf16.mxu0 0
        %950 = vmatpush2.bf16.msra.mxu0 0
        %951 = vmatprep.subr.bf16.mxu0 0
        %952 = vmatpush2.bf16.msra.mxu0 0
        %953 = vmatprep.subr.bf16.mxu0 0
        %954 = vmatpush2.bf16.msra.mxu0 0
        %955 = vmatprep.subr.bf16.mxu0 0
        %956 = vmatpush2.bf16.msra.mxu0 0
        %957 = vmatprep.subr.bf16.mxu0 0
        %958 = vmatpush2.bf16.msra.mxu0 0
        %959 = vmatprep.mubr.bf16.mxu0 0
        %960 = vmatmul.mubr.bf16.gmra.mxu0 %v925
        %v961 = vpop.f32.mrf.mxu0
        %v962 = vadd.f32 0.0, %v961
        %v963 = vpop.f32.mrf.mxu0
        %v964 = vpop.f32.mrf.mxu0
        %v965 = vadd.f32 0.0, %v964
        %v966 = vpop.f32.mrf.mxu0
        %967 = vdwg.mxu0
        %v968 = vpack.c.bf16 %v965, %v962
        %970 = vrot.lane.b32.xlu0 %v844, 120
        %v971 = vpop.permute.xlu0 %970
        %972 = vrot.lane.b32.xlu0 %v845, 88
        %v973 = vpop.permute.xlu0 %972
        %v975 = vsel %vm849, %v971, 0
        %v978 = vsel %vm849, %v973, 0
        %980 = vmatprep.subr.bf16.mxu0 0
        %981 = vmatpush1.bf16.xpose.msra.mxu0 0
        %982 = vmatprep.subr.bf16.mxu0 0
        %983 = vmatpush1.bf16.xpose.msra.mxu0 0
        %984 = vmatprep.subr.bf16.mxu0 0
        %985 = vmatpush1.bf16.xpose.msra.mxu0 0
        %986 = vmatprep.subr.bf16.mxu0 0
        %987 = vmatpush1.bf16.xpose.msra.mxu0 0
        %988 = vmatprep.subr.bf16.mxu0 0
        %989 = vmatpush1.bf16.xpose.msra.mxu0 0
        %990 = vmatprep.subr.bf16.mxu0 0
        %991 = vmatpush1.bf16.xpose.msra.mxu0 0
        %992 = vmatprep.subr.bf16.mxu0 0
        %993 = vmatpush1.bf16.xpose.msra.mxu0 0
        %994 = vmatprep.subr.bf16.mxu0 0
        %995 = vmatpush1.bf16.xpose.msra.mxu0 %v978
        %996 = vmatprep.subr.bf16.mxu0 0
        %997 = vmatpush2.bf16.xpose.msra.mxu0 0
        %998 = vmatprep.subr.bf16.mxu0 0
        %999 = vmatpush2.bf16.xpose.msra.mxu0 0
        %1000 = vmatprep.subr.bf16.mxu0 0
        %1001 = vmatpush2.bf16.xpose.msra.mxu0 0
        %1002 = vmatprep.subr.bf16.mxu0 0
        %1003 = vmatpush2.bf16.xpose.msra.mxu0 0
        %1004 = vmatprep.subr.bf16.mxu0 0
        %1005 = vmatpush2.bf16.xpose.msra.mxu0 0
        %1006 = vmatprep.subr.bf16.mxu0 0
        %1007 = vmatpush2.bf16.xpose.msra.mxu0 0
        %1008 = vmatprep.subr.bf16.mxu0 0
        %1009 = vmatpush2.bf16.xpose.msra.mxu0 0
        %1010 = vmatprep.subr.bf16.mxu0 0
        %1011 = vmatpush2.bf16.xpose.msra.mxu0 0
        %1012 = vmatprep.mubr.bf16.mxu0 0
        %1013 = vmatmul.mubr.bf16.gmra.mxu0 %v975
        %v1014 = vpop.f32.mrf.mxu0
        %v1015 = vadd.f32 %v652, %v1014
        %v1016 = vpop.f32.mrf.mxu0
        %v1017 = vpop.f32.mrf.mxu0
        %v1018 = vadd.f32 %v653, %v1017
        %v1019 = vpop.f32.mrf.mxu0
        %1020 = vdwg.mxu0
        %v1021 = vsel %vm897, %v1015, -inf
        %1022 = vmax.xlane.f32.xlu0 %v1021
        %v1023 = vpop.xlane.xlu0 %1022
        %v1024 = vsel %vm897, %v1018, -inf
        %1025 = vmax.xlane.f32.xlu0 %v1024
        %v1026 = vpop.xlane.xlu0 %1025
        %v1027 = vsub.f32 %v1015, %v1023
        %v1028 = vsub.f32 %v1018, %v1026
        %v1029 = vmul.f32 %v1027, 1.442695
        %v1030 = vpow.pop %v1029
        %v1031 = vmul.f32 %v1028, 1.442695
        %v1032 = vpow.pop %v1031
        %v1033 = vsel %vm897, %v1030, 0.0
        %1034 = vadd.xlane.f32.xlu0 %v1033
        %v1035 = vpop.xlane.xlu0 %1034
        %v1036 = vsel %vm897, %v1032, 0.0
        %1037 = vadd.xlane.f32.xlu0 %v1036
        %v1038 = vpop.xlane.xlu0 %1037
        %v1039 = vrcp.pop %v1035
        %v1040 = vrcp.pop %v1038
        %v1041 = vmul.f32 %v1030, %v1039
        %v1042 = vmul.f32 %v1032, %v1040
        %v1043 = vpack.c.bf16 %v1042, %v1041
        %1044 = vrot.lane.b32.xlu0 %v845, 56
        %v1045 = vpop.permute.xlu0 %1044
        %v1048 = vsel %vm897, %v1043, 0
        %1050 = vmatprep.subr.bf16.mxu0 0
        %1051 = vmatpush1.bf16.msra.mxu0 0
        %1052 = vmatprep.subr.bf16.mxu0 0
        %1053 = vmatpush1.bf16.msra.mxu0 0
        %1054 = vmatprep.subr.bf16.mxu0 0
        %1055 = vmatpush1.bf16.msra.mxu0 0
        %1056 = vmatprep.subr.bf16.mxu0 0
        %1057 = vmatpush1.bf16.msra.mxu0 0
        %1058 = vmatprep.subr.bf16.mxu0 0
        %1059 = vmatpush1.bf16.msra.mxu0 0
        %1060 = vmatprep.subr.bf16.mxu0 0
        %1061 = vmatpush1.bf16.msra.mxu0 0
        %1062 = vmatprep.subr.bf16.mxu0 0
        %1063 = vmatpush1.bf16.msra.mxu0 0
        %1064 = vmatprep.subr.bf16.mxu0 0
        %1065 = vmatpush1.bf16.msra.mxu0 %v1045
        %1066 = vmatprep.subr.bf16.mxu0 0
        %1067 = vmatpush2.bf16.msra.mxu0 0
        %1068 = vmatprep.subr.bf16.mxu0 0
        %1069 = vmatpush2.bf16.msra.mxu0 0
        %1070 = vmatprep.subr.bf16.mxu0 0
        %1071 = vmatpush2.bf16.msra.mxu0 0
        %1072 = vmatprep.subr.bf16.mxu0 0
        %1073 = vmatpush2.bf16.msra.mxu0 0
        %1074 = vmatprep.subr.bf16.mxu0 0
        %1075 = vmatpush2.bf16.msra.mxu0 0
        %1076 = vmatprep.subr.bf16.mxu0 0
        %1077 = vmatpush2.bf16.msra.mxu0 0
        %1078 = vmatprep.subr.bf16.mxu0 0
        %1079 = vmatpush2.bf16.msra.mxu0 0
        %1080 = vmatprep.subr.bf16.mxu0 0
        %1081 = vmatpush2.bf16.msra.mxu0 0
        %1082 = vmatprep.mubr.bf16.mxu0 0
        %1083 = vmatmul.mubr.bf16.gmra.mxu0 %v1048
        %v1084 = vpop.f32.mrf.mxu0
        %v1085 = vadd.f32 0.0, %v1084
        %v1086 = vpop.f32.mrf.mxu0
        %v1087 = vpop.f32.mrf.mxu0
        %v1088 = vadd.f32 0.0, %v1087
        %v1089 = vpop.f32.mrf.mxu0
        %1090 = vdwg.mxu0
        %v1091 = vpack.c.bf16 %v1088, %v1085
        %v1093 = vsel %vm849, %v1091, 0
        %vm1095 = vcmask 1043456
        %v1097 = vsel %vm1095, %v841, 0
        %1099 = vmatprep.subr.bf16.mxu0 0
        %1100 = vmatpush1.bf16.msra.mxu0 0
        %1101 = vmatprep.subr.bf16.mxu0 0
        %1102 = vmatpush1.bf16.msra.mxu0 0
        %1103 = vmatprep.subr.bf16.mxu0 0
        %1104 = vmatpush1.bf16.msra.mxu0 0
        %1105 = vmatprep.subr.bf16.mxu0 0
        %1106 = vmatpush1.bf16.msra.mxu0 0
        %1107 = vmatprep.subr.bf16.mxu0 0
        %1108 = vmatpush1.bf16.msra.mxu0 0
        %1109 = vmatprep.subr.bf16.mxu0 0
        %1110 = vmatpush1.bf16.msra.mxu0 0
        %1111 = vmatprep.subr.bf16.mxu0 0
        %1112 = vmatpush1.bf16.msra.mxu0 0
        %1113 = vmatprep.subr.bf16.mxu0 0
        %1114 = vmatpush1.bf16.msra.mxu0 %v1097
        %1115 = vmatprep.subr.bf16.mxu0 0
        %1116 = vmatpush2.bf16.msra.mxu0 0
        %1117 = vmatprep.subr.bf16.mxu0 0
        %1118 = vmatpush2.bf16.msra.mxu0 0
        %1119 = vmatprep.subr.bf16.mxu0 0
        %1120 = vmatpush2.bf16.msra.mxu0 0
        %1121 = vmatprep.subr.bf16.mxu0 0
        %1122 = vmatpush2.bf16.msra.mxu0 0
        %1123 = vmatprep.subr.bf16.mxu0 0
        %1124 = vmatpush2.bf16.msra.mxu0 0
        %1125 = vmatprep.subr.bf16.mxu0 0
        %1126 = vmatpush2.bf16.msra.mxu0 0
        %1127 = vmatprep.subr.bf16.mxu0 0
        %1128 = vmatpush2.bf16.msra.mxu0 0
        %1129 = vmatprep.subr.bf16.mxu0 0
        %1130 = vmatpush2.bf16.msra.mxu0 0
        %1131 = vmatprep.mubr.bf16.mxu0 0
        %1132 = vmatmul.mubr.bf16.gmra.mxu0 %v1093
        %v1133 = vpop.f32.mrf.mxu0
        %v1134 = vadd.f32 0.0, %v1133
        %v1135 = vpop.f32.mrf.mxu0
        %v1136 = vpop.f32.mrf.mxu0
        %v1137 = vadd.f32 0.0, %v1136
        %v1138 = vpop.f32.mrf.mxu0
        %1139 = vdwg.mxu0
        %v1141 = vsel %vm849, %v968, 0
        %v1144 = vsel %vm1095, %v840, 0
        %1146 = vmatprep.subr.bf16.mxu0 0
        %1147 = vmatpush1.bf16.msra.mxu0 0
        %1148 = vmatprep.subr.bf16.mxu0 0
        %1149 = vmatpush1.bf16.msra.mxu0 0
        %1150 = vmatprep.subr.bf16.mxu0 0
        %1151 = vmatpush1.bf16.msra.mxu0 0
        %1152 = vmatprep.subr.bf16.mxu0 0
        %1153 = vmatpush1.bf16.msra.mxu0 0
        %1154 = vmatprep.subr.bf16.mxu0 0
        %1155 = vmatpush1.bf16.msra.mxu0 0
        %1156 = vmatprep.subr.bf16.mxu0 0
        %1157 = vmatpush1.bf16.msra.mxu0 0
        %1158 = vmatprep.subr.bf16.mxu0 0
        %1159 = vmatpush1.bf16.msra.mxu0 0
        %1160 = vmatprep.subr.bf16.mxu0 0
        %1161 = vmatpush1.bf16.msra.mxu0 %v1144
        %1162 = vmatprep.subr.bf16.mxu0 0
        %1163 = vmatpush2.bf16.msra.mxu0 0
        %1164 = vmatprep.subr.bf16.mxu0 0
        %1165 = vmatpush2.bf16.msra.mxu0 0
        %1166 = vmatprep.subr.bf16.mxu0 0
        %1167 = vmatpush2.bf16.msra.mxu0 0
        %1168 = vmatprep.subr.bf16.mxu0 0
        %1169 = vmatpush2.bf16.msra.mxu0 0
        %1170 = vmatprep.subr.bf16.mxu0 0
        %1171 = vmatpush2.bf16.msra.mxu0 0
        %1172 = vmatprep.subr.bf16.mxu0 0
        %1173 = vmatpush2.bf16.msra.mxu0 0
        %1174 = vmatprep.subr.bf16.mxu0 0
        %1175 = vmatpush2.bf16.msra.mxu0 0
        %1176 = vmatprep.subr.bf16.mxu0 0
        %1177 = vmatpush2.bf16.msra.mxu0 0
        %1178 = vmatprep.mubr.bf16.mxu0 0
        %1179 = vmatmul.mubr.bf16.gmra.mxu0 %v1141
        %v1180 = vpop.f32.mrf.mxu0
        %v1181 = vadd.f32 %v1134, %v1180
        %v1182 = vpop.f32.mrf.mxu0
        %v1183 = vpop.f32.mrf.mxu0
        %v1184 = vadd.f32 %v1137, %v1183
        %v1185 = vpop.f32.mrf.mxu0
        %1186 = vdwg.mxu0
        %1187 = vrot.lane.b32.xlu0 %v844, 112
        %v1188 = vpop.permute.xlu0 %1187
        %1189 = vrot.lane.b32.xlu0 %v845, 80
        %v1190 = vpop.permute.xlu0 %1189
        %v1192 = vsel %vm849, %v1188, 0
        %v1195 = vsel %vm849, %v1190, 0
        %1197 = vmatprep.subr.bf16.mxu0 0
        %1198 = vmatpush1.bf16.xpose.msra.mxu0 0
        %1199 = vmatprep.subr.bf16.mxu0 0
        %1200 = vmatpush1.bf16.xpose.msra.mxu0 0
        %1201 = vmatprep.subr.bf16.mxu0 0
        %1202 = vmatpush1.bf16.xpose.msra.mxu0 0
        %1203 = vmatprep.subr.bf16.mxu0 0
        %1204 = vmatpush1.bf16.xpose.msra.mxu0 0
        %1205 = vmatprep.subr.bf16.mxu0 0
        %1206 = vmatpush1.bf16.xpose.msra.mxu0 0
        %1207 = vmatprep.subr.bf16.mxu0 0
        %1208 = vmatpush1.bf16.xpose.msra.mxu0 0
        %1209 = vmatprep.subr.bf16.mxu0 0
        %1210 = vmatpush1.bf16.xpose.msra.mxu0 0
        %1211 = vmatprep.subr.bf16.mxu0 0
        %1212 = vmatpush1.bf16.xpose.msra.mxu0 %v1195
        %1213 = vmatprep.subr.bf16.mxu0 0
        %1214 = vmatpush2.bf16.xpose.msra.mxu0 0
        %1215 = vmatprep.subr.bf16.mxu0 0
        %1216 = vmatpush2.bf16.xpose.msra.mxu0 0
        %1217 = vmatprep.subr.bf16.mxu0 0
        %1218 = vmatpush2.bf16.xpose.msra.mxu0 0
        %1219 = vmatprep.subr.bf16.mxu0 0
        %1220 = vmatpush2.bf16.xpose.msra.mxu0 0
        %1221 = vmatprep.subr.bf16.mxu0 0
        %1222 = vmatpush2.bf16.xpose.msra.mxu0 0
        %1223 = vmatprep.subr.bf16.mxu0 0
        %1224 = vmatpush2.bf16.xpose.msra.mxu0 0
        %1225 = vmatprep.subr.bf16.mxu0 0
        %1226 = vmatpush2.bf16.xpose.msra.mxu0 0
        %1227 = vmatprep.subr.bf16.mxu0 0
        %1228 = vmatpush2.bf16.xpose.msra.mxu0 0
        %1229 = vmatprep.mubr.bf16.mxu0 0
        %1230 = vmatmul.mubr.bf16.gmra.mxu0 %v1192
        %v1231 = vpop.f32.mrf.mxu0
        %v1232 = vadd.f32 %v652, %v1231
        %v1233 = vpop.f32.mrf.mxu0
        %v1234 = vpop.f32.mrf.mxu0
        %v1235 = vadd.f32 %v653, %v1234
        %v1236 = vpop.f32.mrf.mxu0
        %1237 = vdwg.mxu0
        %v1238 = vsel %vm897, %v1232, -inf
        %1239 = vmax.xlane.f32.xlu0 %v1238
        %v1240 = vpop.xlane.xlu0 %1239
        %v1241 = vsel %vm897, %v1235, -inf
        %1242 = vmax.xlane.f32.xlu0 %v1241
        %v1243 = vpop.xlane.xlu0 %1242
        %v1244 = vsub.f32 %v1232, %v1240
        %v1245 = vsub.f32 %v1235, %v1243
        %v1246 = vmul.f32 %v1244, 1.442695
        %v1247 = vpow.pop %v1246
        %v1248 = vmul.f32 %v1245, 1.442695
        %v1249 = vpow.pop %v1248
        %v1250 = vsel %vm897, %v1247, 0.0
        %1251 = vadd.xlane.f32.xlu0 %v1250
        %v1252 = vpop.xlane.xlu0 %1251
        %v1253 = vsel %vm897, %v1249, 0.0
        %1254 = vadd.xlane.f32.xlu0 %v1253
        %v1255 = vpop.xlane.xlu0 %1254
        %v1256 = vrcp.pop %v1252
        %v1257 = vrcp.pop %v1255
        %v1258 = vmul.f32 %v1247, %v1256
        %v1259 = vmul.f32 %v1249, %v1257
        %v1260 = vpack.c.bf16 %v1259, %v1258
        %1261 = vrot.lane.b32.xlu0 %v845, 48
        %v1262 = vpop.permute.xlu0 %1261
        %v1265 = vsel %vm897, %v1260, 0
        %1267 = vmatprep.subr.bf16.mxu0 0
        %1268 = vmatpush1.bf16.msra.mxu0 0
        %1269 = vmatprep.subr.bf16.mxu0 0
        %1270 = vmatpush1.bf16.msra.mxu0 0
        %1271 = vmatprep.subr.bf16.mxu0 0
        %1272 = vmatpush1.bf16.msra.mxu0 0
        %1273 = vmatprep.subr.bf16.mxu0 0
        %1274 = vmatpush1.bf16.msra.mxu0 0
        %1275 = vmatprep.subr.bf16.mxu0 0
        %1276 = vmatpush1.bf16.msra.mxu0 0
        %1277 = vmatprep.subr.bf16.mxu0 0
        %1278 = vmatpush1.bf16.msra.mxu0 0
        %1279 = vmatprep.subr.bf16.mxu0 0
        %1280 = vmatpush1.bf16.msra.mxu0 0
        %1281 = vmatprep.subr.bf16.mxu0 0
        %1282 = vmatpush1.bf16.msra.mxu0 %v1262
        %1283 = vmatprep.subr.bf16.mxu0 0
        %1284 = vmatpush2.bf16.msra.mxu0 0
        %1285 = vmatprep.subr.bf16.mxu0 0
        %1286 = vmatpush2.bf16.msra.mxu0 0
        %1287 = vmatprep.subr.bf16.mxu0 0
        %1288 = vmatpush2.bf16.msra.mxu0 0
        %1289 = vmatprep.subr.bf16.mxu0 0
        %1290 = vmatpush2.bf16.msra.mxu0 0
        %1291 = vmatprep.subr.bf16.mxu0 0
        %1292 = vmatpush2.bf16.msra.mxu0 0
        %1293 = vmatprep.subr.bf16.mxu0 0
        %1294 = vmatpush2.bf16.msra.mxu0 0
        %1295 = vmatprep.subr.bf16.mxu0 0
        %1296 = vmatpush2.bf16.msra.mxu0 0
        %1297 = vmatprep.subr.bf16.mxu0 0
        %1298 = vmatpush2.bf16.msra.mxu0 0
        %1299 = vmatprep.mubr.bf16.mxu0 0
        %1300 = vmatmul.mubr.bf16.gmra.mxu0 %v1265
        %v1301 = vpop.f32.mrf.mxu0
        %v1302 = vadd.f32 0.0, %v1301
        %v1303 = vpop.f32.mrf.mxu0
        %v1304 = vpop.f32.mrf.mxu0
        %v1305 = vadd.f32 0.0, %v1304
        %v1306 = vpop.f32.mrf.mxu0
        %1307 = vdwg.mxu0
        %v1308 = vpack.c.bf16 %v1305, %v1302
        %v1310 = vsel %vm849, %v1308, 0
        %v1313 = vsel %vm1095, %v842, 0
        %1315 = vmatprep.subr.bf16.mxu0 0
        %1316 = vmatpush1.bf16.msra.mxu0 0
        %1317 = vmatprep.subr.bf16.mxu0 0
        %1318 = vmatpush1.bf16.msra.mxu0 0
        %1319 = vmatprep.subr.bf16.mxu0 0
        %1320 = vmatpush1.bf16.msra.mxu0 0
        %1321 = vmatprep.subr.bf16.mxu0 0
        %1322 = vmatpush1.bf16.msra.mxu0 0
        %1323 = vmatprep.subr.bf16.mxu0 0
        %1324 = vmatpush1.bf16.msra.mxu0 0
        %1325 = vmatprep.subr.bf16.mxu0 0
        %1326 = vmatpush1.bf16.msra.mxu0 0
        %1327 = vmatprep.subr.bf16.mxu0 0
        %1328 = vmatpush1.bf16.msra.mxu0 0
        %1329 = vmatprep.subr.bf16.mxu0 0
        %1330 = vmatpush1.bf16.msra.mxu0 %v1313
        %1331 = vmatprep.subr.bf16.mxu0 0
        %1332 = vmatpush2.bf16.msra.mxu0 0
        %1333 = vmatprep.subr.bf16.mxu0 0
        %1334 = vmatpush2.bf16.msra.mxu0 0
        %1335 = vmatprep.subr.bf16.mxu0 0
        %1336 = vmatpush2.bf16.msra.mxu0 0
        %1337 = vmatprep.subr.bf16.mxu0 0
        %1338 = vmatpush2.bf16.msra.mxu0 0
        %1339 = vmatprep.subr.bf16.mxu0 0
        %1340 = vmatpush2.bf16.msra.mxu0 0
        %1341 = vmatprep.subr.bf16.mxu0 0
        %1342 = vmatpush2.bf16.msra.mxu0 0
        %1343 = vmatprep.subr.bf16.mxu0 0
        %1344 = vmatpush2.bf16.msra.mxu0 0
        %1345 = vmatprep.subr.bf16.mxu0 0
        %1346 = vmatpush2.bf16.msra.mxu0 0
        %1347 = vmatprep.mubr.bf16.mxu0 0
        %1348 = vmatmul.mubr.bf16.gmra.mxu0 %v1310
        %v1349 = vpop.f32.mrf.mxu0
        %v1350 = vadd.f32 0.0, %v1349
        %v1351 = vpop.f32.mrf.mxu0
        %v1352 = vpop.f32.mrf.mxu0
        %v1353 = vadd.f32 0.0, %v1352
        %v1354 = vpop.f32.mrf.mxu0
        %1355 = vdwg.mxu0
        %v1356 = vadd.f32 %v1181, %v1350
        %v1357 = vadd.f32 %v1184, %v1353
        %1358 = vrot.lane.b32.xlu0 %v844, 104
        %v1359 = vpop.permute.xlu0 %1358
        %1360 = vrot.lane.b32.xlu0 %v845, 72
        %v1361 = vpop.permute.xlu0 %1360
        %v1363 = vsel %vm849, %v1359, 0
        %v1366 = vsel %vm849, %v1361, 0
        %1368 = vmatprep.subr.bf16.mxu0 0
        %1369 = vmatpush1.bf16.xpose.msra.mxu0 0
        %1370 = vmatprep.subr.bf16.mxu0 0
        %1371 = vmatpush1.bf16.xpose.msra.mxu0 0
        %1372 = vmatprep.subr.bf16.mxu0 0
        %1373 = vmatpush1.bf16.xpose.msra.mxu0 0
        %1374 = vmatprep.subr.bf16.mxu0 0
        %1375 = vmatpush1.bf16.xpose.msra.mxu0 0
        %1376 = vmatprep.subr.bf16.mxu0 0
        %1377 = vmatpush1.bf16.xpose.msra.mxu0 0
        %1378 = vmatprep.subr.bf16.mxu0 0
        %1379 = vmatpush1.bf16.xpose.msra.mxu0 0
        %1380 = vmatprep.subr.bf16.mxu0 0
        %1381 = vmatpush1.bf16.xpose.msra.mxu0 0
        %1382 = vmatprep.subr.bf16.mxu0 0
        %1383 = vmatpush1.bf16.xpose.msra.mxu0 %v1366
        %1384 = vmatprep.subr.bf16.mxu0 0
        %1385 = vmatpush2.bf16.xpose.msra.mxu0 0
        %1386 = vmatprep.subr.bf16.mxu0 0
        %1387 = vmatpush2.bf16.xpose.msra.mxu0 0
        %1388 = vmatprep.subr.bf16.mxu0 0
        %1389 = vmatpush2.bf16.xpose.msra.mxu0 0
        %1390 = vmatprep.subr.bf16.mxu0 0
        %1391 = vmatpush2.bf16.xpose.msra.mxu0 0
        %1392 = vmatprep.subr.bf16.mxu0 0
        %1393 = vmatpush2.bf16.xpose.msra.mxu0 0
        %1394 = vmatprep.subr.bf16.mxu0 0
        %1395 = vmatpush2.bf16.xpose.msra.mxu0 0
        %1396 = vmatprep.subr.bf16.mxu0 0
        %1397 = vmatpush2.bf16.xpose.msra.mxu0 0
        %1398 = vmatprep.subr.bf16.mxu0 0
        %1399 = vmatpush2.bf16.xpose.msra.mxu0 0
        %1400 = vmatprep.mubr.bf16.mxu0 0
        %1401 = vmatmul.mubr.bf16.gmra.mxu0 %v1363
        %v1402 = vpop.f32.mrf.mxu0
        %v1403 = vadd.f32 %v652, %v1402
        %v1404 = vpop.f32.mrf.mxu0
        %v1405 = vpop.f32.mrf.mxu0
        %v1406 = vadd.f32 %v653, %v1405
        %v1407 = vpop.f32.mrf.mxu0
        %1408 = vdwg.mxu0
        %v1409 = vsel %vm897, %v1403, -inf
        %1410 = vmax.xlane.f32.xlu0 %v1409
        %v1411 = vpop.xlane.xlu0 %1410
        %v1412 = vsel %vm897, %v1406, -inf
        %1413 = vmax.xlane.f32.xlu0 %v1412
        %v1414 = vpop.xlane.xlu0 %1413
        %v1415 = vsub.f32 %v1403, %v1411
        %v1416 = vsub.f32 %v1406, %v1414
        %v1417 = vmul.f32 %v1415, 1.442695
        %v1418 = vpow.pop %v1417
        %v1419 = vmul.f32 %v1416, 1.442695
        %v1420 = vpow.pop %v1419
        %v1421 = vsel %vm897, %v1418, 0.0
        %1422 = vadd.xlane.f32.xlu0 %v1421
        %v1423 = vpop.xlane.xlu0 %1422
        %v1424 = vsel %vm897, %v1420, 0.0
        %1425 = vadd.xlane.f32.xlu0 %v1424
        %v1426 = vpop.xlane.xlu0 %1425
        %v1427 = vrcp.pop %v1423
        %v1428 = vrcp.pop %v1426
        %v1429 = vmul.f32 %v1418, %v1427
        %v1430 = vmul.f32 %v1420, %v1428
        %v1431 = vpack.c.bf16 %v1430, %v1429
        %1432 = vrot.lane.b32.xlu0 %v845, 40
        %v1433 = vpop.permute.xlu0 %1432
        %v1436 = vsel %vm897, %v1431, 0
        %1438 = vmatprep.subr.bf16.mxu0 0
        %1439 = vmatpush1.bf16.msra.mxu0 0
        %1440 = vmatprep.subr.bf16.mxu0 0
        %1441 = vmatpush1.bf16.msra.mxu0 0
        %1442 = vmatprep.subr.bf16.mxu0 0
        %1443 = vmatpush1.bf16.msra.mxu0 0
        %1444 = vmatprep.subr.bf16.mxu0 0
        %1445 = vmatpush1.bf16.msra.mxu0 0
        %1446 = vmatprep.subr.bf16.mxu0 0
        %1447 = vmatpush1.bf16.msra.mxu0 0
        %1448 = vmatprep.subr.bf16.mxu0 0
        %1449 = vmatpush1.bf16.msra.mxu0 0
        %1450 = vmatprep.subr.bf16.mxu0 0
        %1451 = vmatpush1.bf16.msra.mxu0 0
        %1452 = vmatprep.subr.bf16.mxu0 0
        %1453 = vmatpush1.bf16.msra.mxu0 %v1433
        %1454 = vmatprep.subr.bf16.mxu0 0
        %1455 = vmatpush2.bf16.msra.mxu0 0
        %1456 = vmatprep.subr.bf16.mxu0 0
        %1457 = vmatpush2.bf16.msra.mxu0 0
        %1458 = vmatprep.subr.bf16.mxu0 0
        %1459 = vmatpush2.bf16.msra.mxu0 0
        %1460 = vmatprep.subr.bf16.mxu0 0
        %1461 = vmatpush2.bf16.msra.mxu0 0
        %1462 = vmatprep.subr.bf16.mxu0 0
        %1463 = vmatpush2.bf16.msra.mxu0 0
        %1464 = vmatprep.subr.bf16.mxu0 0
        %1465 = vmatpush2.bf16.msra.mxu0 0
        %1466 = vmatprep.subr.bf16.mxu0 0
        %1467 = vmatpush2.bf16.msra.mxu0 0
        %1468 = vmatprep.subr.bf16.mxu0 0
        %1469 = vmatpush2.bf16.msra.mxu0 0
        %1470 = vmatprep.mubr.bf16.mxu0 0
        %1471 = vmatmul.mubr.bf16.gmra.mxu0 %v1436
        %v1472 = vpop.f32.mrf.mxu0
        %v1473 = vadd.f32 0.0, %v1472
        %v1474 = vpop.f32.mrf.mxu0
        %v1475 = vpop.f32.mrf.mxu0
        %v1476 = vadd.f32 0.0, %v1475
        %v1477 = vpop.f32.mrf.mxu0
        %1478 = vdwg.mxu0
        %v1479 = vpack.c.bf16 %v1476, %v1473
        %v1481 = vsel %vm849, %v1479, 0
        %v1484 = vsel %vm1095, %v843, 0
        %1486 = vmatprep.subr.bf16.mxu0 0
        %1487 = vmatpush1.bf16.msra.mxu0 0
        %1488 = vmatprep.subr.bf16.mxu0 0
        %1489 = vmatpush1.bf16.msra.mxu0 0
        %1490 = vmatprep.subr.bf16.mxu0 0
        %1491 = vmatpush1.bf16.msra.mxu0 0
        %1492 = vmatprep.subr.bf16.mxu0 0
        %1493 = vmatpush1.bf16.msra.mxu0 0
        %1494 = vmatprep.subr.bf16.mxu0 0
        %1495 = vmatpush1.bf16.msra.mxu0 0
        %1496 = vmatprep.subr.bf16.mxu0 0
        %1497 = vmatpush1.bf16.msra.mxu0 0
        %1498 = vmatprep.subr.bf16.mxu0 0
        %1499 = vmatpush1.bf16.msra.mxu0 0
        %1500 = vmatprep.subr.bf16.mxu0 0
        %1501 = vmatpush1.bf16.msra.mxu0 %v1484
        %1502 = vmatprep.subr.bf16.mxu0 0
        %1503 = vmatpush2.bf16.msra.mxu0 0
        %1504 = vmatprep.subr.bf16.mxu0 0
        %1505 = vmatpush2.bf16.msra.mxu0 0
        %1506 = vmatprep.subr.bf16.mxu0 0
        %1507 = vmatpush2.bf16.msra.mxu0 0
        %1508 = vmatprep.subr.bf16.mxu0 0
        %1509 = vmatpush2.bf16.msra.mxu0 0
        %1510 = vmatprep.subr.bf16.mxu0 0
        %1511 = vmatpush2.bf16.msra.mxu0 0
        %1512 = vmatprep.subr.bf16.mxu0 0
        %1513 = vmatpush2.bf16.msra.mxu0 0
        %1514 = vmatprep.subr.bf16.mxu0 0
        %1515 = vmatpush2.bf16.msra.mxu0 0
        %1516 = vmatprep.subr.bf16.mxu0 0
        %1517 = vmatpush2.bf16.msra.mxu0 0
        %1518 = vmatprep.mubr.bf16.mxu0 0
        %1519 = vmatmul.mubr.bf16.gmra.mxu0 %v1481
        %v1520 = vpop.f32.mrf.mxu0
        %v1521 = vadd.f32 0.0, %v1520
        %v1522 = vpop.f32.mrf.mxu0
        %v1523 = vpop.f32.mrf.mxu0
        %v1524 = vadd.f32 0.0, %v1523
        %v1525 = vpop.f32.mrf.mxu0
        %1526 = vdwg.mxu0
        %v1527 = vadd.f32 %v1356, %v1521
        %v1528 = vadd.f32 %v1357, %v1524
        %v1529 = vld [vmem:[%s589] sm:$0x3f]
        %v1530 = vlaneseq
        %v1531 = vshrl.u32 %v1530, 7
        %v1532 = vsub.s32 0, %v1531
        %v1533 = vrot.slane %v1529, %v1532
        %v1534 = vadd.f32 %v1527, %v1533
        %v1535 = vadd.f32 %v1528, %v1533
        %v1536 = vadd.f32 %v1534, %v767
        %v1537 = vadd.f32 %v1535, %v768
        %v1538 = vsel %vm793, %v1536, 0.0
        %1539 = vadd.xlane.f32.xlu0 %v1538
        %v1540 = vpop.xlane.xlu0 %1539
        %v1541 = vsel %vm793, %v1537, 0.0
        %1542 = vadd.xlane.f32.xlu0 %v1541
        %v1543 = vpop.xlane.xlu0 %1542
        %v1544 = vrcp.pop 32.0
        %v1545 = vmul.f32 %v1540, %v1544
        %v1546 = vmul.f32 %v1543, %v1544
        %v1547 = vsub.f32 %v1536, %v1545
        %v1548 = vsub.f32 %v1537, %v1546
        %v1549 = vmul.f32 %v1547, %v1547
        %v1550 = vmul.f32 %v1548, %v1548
        %v1551 = vsel %vm793, %v1549, 0.0
        %1552 = vadd.xlane.f32.xlu0 %v1551
        %v1553 = vpop.xlane.xlu0 %1552
        %v1554 = vsel %vm793, %v1550, 0.0
        %1555 = vadd.xlane.f32.xlu0 %v1554
        %v1556 = vpop.xlane.xlu0 %1555
        %v1557 = vmul.f32 %v1553, %v1544
        %v1558 = vmul.f32 %v1556, %v1544
        %v1559 = vadd.f32 %v1557, 1e-05
        %v1560 = vadd.f32 %v1558, 1e-05
        %v1561 = vrsqrt.pop %v1559
        %v1562 = vrsqrt.pop %v1560
        %v1563 = vmul.f32 %v1547, %v1561
        %v1564 = vmul.f32 %v1548, %v1562
        %v1565 = vlaneseq
        %v1566 = vshrl.u32 %v1565, 7
        %v1567 = vsub.s32 1, %v1566
        %v1568 = vrot.slane %v1529, %v1567
        %v1569 = vmul.f32 %v1563, %v1568
        %v1570 = vmul.f32 %v1564, %v1568
        %v1571 = vlaneseq
        %v1572 = vshrl.u32 %v1571, 7
        %v1573 = vsub.s32 2, %v1572
        %v1574 = vrot.slane %v1529, %v1573
        %v1575 = vadd.f32 %v1569, %v1574
        %v1576 = vadd.f32 %v1570, %v1574
        %v1577 = vmul.f32 %v1575, %v642
        %v1578 = vmul.f32 %v1576, %v643
        %v1579 = vpack.c.bf16 %v1578, %v1577
        %v1580 = vld [vmem:[%s580] sm:$0xf]
        %v1581 = vld [vmem:[%s580 + $0x4] sm:$0xf]
        %v1582 = vld [vmem:[%s580 + $0x8] sm:$0xf]
        %v1583 = vld [vmem:[%s580 + $0xc] sm:$0xf]
        %v1584 = vld [vmem:[%s504] sm:$0x1]
        %v1586 = vlaneseq
        %v1587 = vshrl.u32 %v1586, 7
        %v1588 = vsub.s32 0, %v1587
        %v1589 = vrot.slane %v1584, %v1588
        %v1595 = vunpack.c.l.b16 %v1580
        %v1596 = vunpack.c.l.b16 %v1581
        %v1597 = vunpack.c.l.b16 %v1582
        %v1598 = vunpack.c.l.b16 %v1583
        %v1599 = vpack.c.b16 %v1596, %v1595
        %v1600 = vpack.c.b16 %v1598, %v1597
        %v1604 = vsel %vm793, %v1579, 0
        %1606 = vmatprep.subr.bf16.mxu0 0
        %1607 = vmatpush1.bf16.msra.mxu0 0
        %1608 = vmatprep.subr.bf16.mxu0 0
        %1609 = vmatpush1.bf16.msra.mxu0 0
        %1610 = vmatprep.subr.bf16.mxu0 0
        %1611 = vmatpush1.bf16.msra.mxu0 0
        %1612 = vmatprep.subr.bf16.mxu0 0
        %1613 = vmatpush1.bf16.msra.mxu0 0
        %1614 = vmatprep.subr.bf16.mxu0 0
        %1615 = vmatpush1.bf16.msra.mxu0 0
        %1616 = vmatprep.subr.bf16.mxu0 0
        %1617 = vmatpush1.bf16.msra.mxu0 0
        %1618 = vmatprep.subr.bf16.mxu0 0
        %1619 = vmatpush1.bf16.msra.mxu0 %v1600
        %1620 = vmatprep.subr.bf16.mxu0 0
        %1621 = vmatpush1.bf16.msra.mxu0 %v1599
        %1622 = vmatprep.subr.bf16.mxu0 0
        %1623 = vmatpush2.bf16.msra.mxu0 0
        %1624 = vmatprep.subr.bf16.mxu0 0
        %1625 = vmatpush2.bf16.msra.mxu0 0
        %1626 = vmatprep.subr.bf16.mxu0 0
        %1627 = vmatpush2.bf16.msra.mxu0 0
        %1628 = vmatprep.subr.bf16.mxu0 0
        %1629 = vmatpush2.bf16.msra.mxu0 0
        %1630 = vmatprep.subr.bf16.mxu0 0
        %1631 = vmatpush2.bf16.msra.mxu0 0
        %1632 = vmatprep.subr.bf16.mxu0 0
        %1633 = vmatpush2.bf16.msra.mxu0 0
        %1634 = vmatprep.subr.bf16.mxu0 0
        %1635 = vmatpush2.bf16.msra.mxu0 0
        %1636 = vmatprep.subr.bf16.mxu0 0
        %1637 = vmatpush2.bf16.msra.mxu0 0
        %1638 = vmatprep.mubr.bf16.mxu0 0
        %1639 = vmatmul.mubr.bf16.gmra.mxu0 %v1604
        %v1640 = vpop.f32.mrf.mxu0
        %v1641 = vadd.f32 %v1589, %v1640
        %v1642 = vpop.f32.mrf.mxu0
        %v1643 = vpop.f32.mrf.mxu0
        %v1644 = vadd.f32 %v1589, %v1643
        %v1645 = vpop.f32.mrf.mxu0
        %1646 = vdwg.mxu0
        %v1647 = vmax.f32 %v1641, 0.0
        %v1648 = vmax.f32 %v1644, 0.0
        %v1649 = vpack.c.bf16 %v1648, %v1647
        %v1650 = vld [vmem:[%s585] sm:$0xf]
        %v1651 = vld [vmem:[%s585 + $0x4] sm:$0xf]
        %v1652 = vld [vmem:[%s585 + $0x8] sm:$0xf]
        %v1653 = vld [vmem:[%s585 + $0xc] sm:$0xf]
        %v1654 = vld [vmem:[%s585 + $0x10] sm:$0xf]
        %v1655 = vld [vmem:[%s585 + $0x14] sm:$0xf]
        %v1656 = vld [vmem:[%s585 + $0x18] sm:$0xf]
        %v1657 = vld [vmem:[%s585 + $0x1c] sm:$0xf]
        %v1658 = vlaneseq
        %v1659 = vshrl.u32 %v1658, 7
        %v1660 = vsub.s32 3, %v1659
        %v1661 = vrot.slane %v1529, %v1660
        %v1670 = vunpack.c.l.b16 %v1650
        %v1671 = vunpack.c.l.b16 %v1651
        %v1672 = vunpack.c.l.b16 %v1652
        %v1673 = vunpack.c.l.b16 %v1653
        %v1674 = vunpack.c.l.b16 %v1654
        %v1675 = vunpack.c.l.b16 %v1655
        %v1676 = vunpack.c.l.b16 %v1656
        %v1677 = vunpack.c.l.b16 %v1657
        %v1678 = vpack.c.b16 %v1671, %v1670
        %v1679 = vpack.c.b16 %v1673, %v1672
        %v1680 = vpack.c.b16 %v1675, %v1674
        %v1681 = vpack.c.b16 %v1677, %v1676
        %vm1686 = vcmask 523264
        %v1688 = vsel %vm1686, %v1649, 0
        %1690 = vmatprep.subr.bf16.mxu0 0
        %1691 = vmatpush1.bf16.msra.mxu0 0
        %1692 = vmatprep.subr.bf16.mxu0 0
        %1693 = vmatpush1.bf16.msra.mxu0 0
        %1694 = vmatprep.subr.bf16.mxu0 0
        %1695 = vmatpush1.bf16.msra.mxu0 0
        %1696 = vmatprep.subr.bf16.mxu0 0
        %1697 = vmatpush1.bf16.msra.mxu0 0
        %1698 = vmatprep.subr.bf16.mxu0 0
        %1699 = vmatpush1.bf16.msra.mxu0 %v1681
        %1700 = vmatprep.subr.bf16.mxu0 0
        %1701 = vmatpush1.bf16.msra.mxu0 %v1680
        %1702 = vmatprep.subr.bf16.mxu0 0
        %1703 = vmatpush1.bf16.msra.mxu0 %v1679
        %1704 = vmatprep.subr.bf16.mxu0 0
        %1705 = vmatpush1.bf16.msra.mxu0 %v1678
        %1706 = vmatprep.subr.bf16.mxu0 0
        %1707 = vmatpush2.bf16.msra.mxu0 0
        %1708 = vmatprep.subr.bf16.mxu0 0
        %1709 = vmatpush2.bf16.msra.mxu0 0
        %1710 = vmatprep.subr.bf16.mxu0 0
        %1711 = vmatpush2.bf16.msra.mxu0 0
        %1712 = vmatprep.subr.bf16.mxu0 0
        %1713 = vmatpush2.bf16.msra.mxu0 0
        %1714 = vmatprep.subr.bf16.mxu0 0
        %1715 = vmatpush2.bf16.msra.mxu0 0
        %1716 = vmatprep.subr.bf16.mxu0 0
        %1717 = vmatpush2.bf16.msra.mxu0 0
        %1718 = vmatprep.subr.bf16.mxu0 0
        %1719 = vmatpush2.bf16.msra.mxu0 0
        %1720 = vmatprep.subr.bf16.mxu0 0
        %1721 = vmatpush2.bf16.msra.mxu0 0
        %1722 = vmatprep.mubr.bf16.mxu0 0
        %1723 = vmatmul.mubr.bf16.gmra.mxu0 %v1688
        %v1724 = vpop.f32.mrf.mxu0
        %v1725 = vadd.f32 %v1661, %v1724
        %v1726 = vpop.f32.mrf.mxu0
        %v1727 = vpop.f32.mrf.mxu0
        %v1728 = vadd.f32 %v1661, %v1727
        %v1729 = vpop.f32.mrf.mxu0
        %1730 = vdwg.mxu0
        %v1731 = vadd.f32 %v1725, %v1577
        %v1732 = vadd.f32 %v1728, %v1578
        %v1733 = vsel %vm793, %v1731, 0.0
        %1734 = vadd.xlane.f32.xlu0 %v1733
        %v1735 = vpop.xlane.xlu0 %1734
        %v1736 = vsel %vm793, %v1732, 0.0
        %1737 = vadd.xlane.f32.xlu0 %v1736
        %v1738 = vpop.xlane.xlu0 %1737
        %v1739 = vmul.f32 %v1735, %v1544
        %v1740 = vmul.f32 %v1738, %v1544
        %v1741 = vsub.f32 %v1731, %v1739
        %v1742 = vsub.f32 %v1732, %v1740
        %v1743 = vmul.f32 %v1741, %v1741
        %v1744 = vmul.f32 %v1742, %v1742
        %v1745 = vsel %vm793, %v1743, 0.0
        %1746 = vadd.xlane.f32.xlu0 %v1745
        %v1747 = vpop.xlane.xlu0 %1746
        %v1748 = vsel %vm793, %v1744, 0.0
        %1749 = vadd.xlane.f32.xlu0 %v1748
        %v1750 = vpop.xlane.xlu0 %1749
        %v1751 = vmul.f32 %v1747, %v1544
        %v1752 = vmul.f32 %v1750, %v1544
        %v1753 = vadd.f32 %v1751, 1e-05
        %v1754 = vadd.f32 %v1752, 1e-05
        %v1755 = vrsqrt.pop %v1753
        %v1756 = vrsqrt.pop %v1754
        %v1757 = vmul.f32 %v1741, %v1755
        %v1758 = vmul.f32 %v1742, %v1756
        %v1759 = vlaneseq
        %v1760 = vshrl.u32 %v1759, 7
        %v1761 = vsub.s32 4, %v1760
        %v1762 = vrot.slane %v1529, %v1761
        %v1763 = vmul.f32 %v1757, %v1762
        %v1764 = vmul.f32 %v1758, %v1762
        %v1765 = vlaneseq
        %v1766 = vshrl.u32 %v1765, 7
        %v1767 = vsub.s32 5, %v1766
        %v1768 = vrot.slane %v1529, %v1767
        %v1769 = vadd.f32 %v1763, %v1768
        %v1770 = vadd.f32 %v1764, %v1768
        %v1771 = vmul.f32 %v1769, %v642
        %v1772 = vmul.f32 %v1770, %v643
        %1773 = vst.msk [vmem:[#allocation13] sm:$0xff] %vm793, %v1771
        %1774 = vst.msk [vmem:[#allocation13 + $0x8] sm:$0xff] %vm793, %v1772
        // Predicated region
        $region89: #{tpu_custom_call.1} parent=63 // pred_check
          %p1775 = pneg %p334
        $region90: #{tpu_custom_call.1} parent=63 // pred_check_branch
          %1777 = sbr.rel (%p1775) target = $region92
        $region91: #{tpu_custom_call.1} parent=63 // pred_region
          %s1778 = smul.u32 2, %s37
          %s1780 = ssub.s32 256, 256
          %1781 = vsyncadd [#allocation6], %s1780
          %s1782 = smul.addr %s1778, 128
          %s1783 = scalar_lea.hbm %s12, %s1782
          %s1784 = sshll.u32 [#allocation13], 4
          %s1785 = int_to_ptr.vmem [resolvable:$true] %s1784
          %1790 = dma.vmem_to_hbm [thread:$0]  %s1785, 256, %s1783, [#allocation6], 128, 128, 8
        $region92: #{tpu_custom_call.1} parent=63 // pred_fallthru
          _
        // Predicated region
        $region93: #{tpu_custom_call.1} parent=63 // pred_check
          %p1791 = pneg %p334
        $region94: #{tpu_custom_call.1} parent=63 // pred_check_branch
          %1793 = sbr.rel (%p1791) target = $region96
        $region95: #{tpu_custom_call.1} parent=63 // pred_region
          %1794 = dma.done [#allocation6], 256
        $region96: #{tpu_custom_call.1} parent=63 // pred_fallthru
          _
      $region64: #{tpu_custom_call.1} parent=5 // pred_fallthru
        _
      %p1795 = scmp.le.s32.totalorder 2, %s28
      // Predicated region
      $region97: #{tpu_custom_call.1} parent=5 // pred_check
        %p1796 = pneg %p1795
      $region98: #{tpu_custom_call.1} parent=5 // pred_check_branch
        %1798 = sbr.rel (%p1796) target = $region100
      $region99: #{tpu_custom_call.1} parent=5 // pred_region
        %s1799 = ssub.s32 %s28, 2
      $region100: #{tpu_custom_call.1} parent=5 // pred_fallthru
        _
    $region6: #{tpu_custom_call.1} parent=1 // loop_footer
      %s32 = sadd.s32 1, %s28
    $region7: #{tpu_custom_call.1} parent=1 // loop_footer_branch
      %27 = sbr.rel target = $region3
    $region8: #{tpu_custom_call.1} parent=1 // loop_exit
      _
    %1800 = vsyncpa [#allocation5], 1
    %s1801 = scalar_lea.sflag [#allocation5], 1
    %1802 = vsyncpa %s1801, 1
    %1803 = vsyncpa [#allocation8], 1
    %1804 = vsyncpa [#allocation11], 1
    %s1805 = scalar_lea.sflag [#allocation11], 1
    %1806 = vsyncpa %s1805, 1
    %1807 = vsyncpa [#allocation6], 1
    %s1808 = scalar_lea.sflag [#allocation6], 1
    %1809 = vsyncpa %s1808, 1

</llo_original>
